<compile_context>
chip_gen: v5e
topology: v5e:2x2
jax: 0.10.0
libtpu: 0.0.40
codegen_flags: <defaults>
</compile_context>

<pallas_src>
import functools

import jax
import jax.numpy as jnp
from jax import lax
from jax.experimental import pallas as pl
from jax.experimental.pallas import tpu as pltpu


def _lstm_stack_kernel(x_ref,      # (B, T, C_in)      f32
                       wblk_ref,   # (C_in + 2H, 8H)   bf16  [[Wih1^T,0],[Whh1^T,0],[0,Whh2^T]]
                       b1_ref,     # (1, 4H)           f32   b_ih1 + b_hh1
                       wih2_ref,   # (H, 4H)           bf16
                       b2_ref,     # (1, 4H)           f32   b_ih2 + b_hh2
                       wd_ref,     # (H, C_out)        bf16
                       bd_ref,     # (1, C_out)        f32
                       out_ref):   # (B, C_out)        f32
    B, T, _ = x_ref.shape
    H = wih2_ref.shape[0]
    G = 4 * H

    # ---- hoisted (loop-invariant) weight loads & bias broadcasts: read once ----
    w_blk = wblk_ref[...]
    wih2 = wih2_ref[...]
    wd = wd_ref[...]
    b1 = jnp.broadcast_to(b1_ref[...], (B, G))
    b2 = jnp.broadcast_to(b2_ref[...], (B, G))
    bd = bd_ref[...]

    def gate_act(gates, c_prev):
        # Whole-vreg activations first (2 EUP passes instead of 4 partial ones),
        # then lane extraction. PyTorch gate order [i, f, g, o].
        sig = jax.nn.sigmoid(gates)
        tnh = jnp.tanh(gates)
        i = sig[:, 0 * H:1 * H]
        f = sig[:, 1 * H:2 * H]
        g = tnh[:, 2 * H:3 * H]
        o = sig[:, 3 * H:4 * H]
        c_new = f * c_prev + i * g
        h_new = o * jnp.tanh(c_new)
        return h_new, c_new

    h1 = jnp.zeros((B, H), jnp.float32)
    c1 = jnp.zeros((B, H), jnp.float32)
    h2 = jnp.zeros((B, H), jnp.float32)
    c2 = jnp.zeros((B, H), jnp.float32)

    # Statically-unrolled recurrence (T is small and compile-time known).
    # For large seq_len, switch to lax.fori_loop(..., unroll=k) with a dynamic x slice.
    for t in range(T):
        x_t = x_ref[:, t, :]                                           # (B, C_in)
        # One 256-wide MXU pass: layer-1 gates (input + recurrent) and layer-2's
        # recurrent half, via the block-diagonal weight.
        z = jnp.concatenate([x_t, h1, h2], axis=1).astype(jnp.bfloat16)  # (B, C_in+2H)
        rec = jnp.dot(z, w_blk, preferred_element_type=jnp.float32)      # (B, 8H)
        gates1 = rec[:, :G] + b1
        h1, c1 = gate_act(gates1, c1)
        # Only h1_new @ Wih2^T remains on the serial critical path.
        gates2 = (jnp.dot(h1.astype(jnp.bfloat16), wih2,
                          preferred_element_type=jnp.float32)
                  + rec[:, G:] + b2)
        h2, c2 = gate_act(gates2, c2)

    # Final dense projection of LSTM2's last hidden state.
    out_ref[...] = (jnp.dot(h2.astype(jnp.bfloat16), wd,
                            preferred_element_type=jnp.float32) + bd)


def lstm_model_forward(x, params, *, seq_len, in_channels, out_channels, lstm_units):
    """Pallas implementation of Model.forward.

    x: any array with B * seq_len * in_channels elements (like the PyTorch reshape).
    Returns: (B, out_channels) float32.
    """
    B = x.shape[0]
    H = lstm_units
    T = seq_len
    x = x.reshape(B, T, in_channels).astype(jnp.float32)

    wdt = jnp.bfloat16
    z_in = jnp.zeros((in_channels, 4 * H), jnp.float32)
    z_h = jnp.zeros((H, 4 * H), jnp.float32)
    # Block weight [[Wih1^T, 0], [Whh1^T, 0], [0, Whh2^T]] -> (C_in + 2H, 8H).
    w_blk = jnp.concatenate([
        jnp.concatenate([params["wih1_t"], z_in], axis=1),
        jnp.concatenate([params["whh1_t"], z_h], axis=1),
        jnp.concatenate([z_h, params["whh2_t"]], axis=1),
    ], axis=0).astype(wdt)
    wih2 = params["wih2_t"].astype(wdt)
    wd = params["wd_t"].astype(wdt)

    full = lambda shape: pl.BlockSpec(shape, lambda i: tuple(0 for _ in shape))

    out = pl.pallas_call(
        _lstm_stack_kernel,
        out_shape=jax.ShapeDtypeStruct((B, out_channels), jnp.float32),
        grid_spec=pltpu.PrefetchScalarGridSpec(
            num_scalar_prefetch=0,
            grid=(1,),   # single grid step: the whole recurrence is an in-kernel loop
            in_specs=[
                full((B, T, in_channels)),           # x (whole, batch-major)
                full((in_channels + 2 * H, 8 * H)),  # fused block weight (bf16)
                full((1, 4 * H)),                    # b1
                full((H, 4 * H)),                    # Wih2^T (bf16)
                full((1, 4 * H)),                    # b2
                full((H, out_channels)),             # W_dense^T (bf16)
                full((1, out_channels)),             # b_dense
            ],
            out_specs=pl.BlockSpec((B, out_channels), lambda i: (0, 0)),
        ),
        compiler_params=pltpu.CompilerParams(
            dimension_semantics=("arbitrary",)),
    )(x, w_blk, params["b1"], wih2, params["b2"], wd, params["bd"])
    return out


def init_params(key, *, in_channels, out_channels, lstm_units):
    """Deterministic PyTorch-style init (uniform +/-1/sqrt(H)); weights stored transposed."""
    H = lstm_units
    bound = 1.0 / jnp.sqrt(jnp.float32(H))
    keys = jax.random.split(key, 10)
    u = lambda k, shape: jax.random.uniform(k, shape, jnp.float32, -bound, bound)

    wih1 = u(keys[0], (4 * H, in_channels))
    whh1 = u(keys[1], (4 * H, H))
    bih1 = u(keys[2], (4 * H,))
    bhh1 = u(keys[3], (4 * H,))
    wih2 = u(keys[4], (4 * H, H))
    whh2 = u(keys[5], (4 * H, H))
    bih2 = u(keys[6], (4 * H,))
    bhh2 = u(keys[7], (4 * H,))
    wd = u(keys[8], (out_channels, H))
    bd = u(keys[9], (out_channels,))

    return dict(
        wih1_t=wih1.T, whh1_t=whh1.T, b1=(bih1 + bhh1)[None, :],
        wih2_t=wih2.T, whh2_t=whh2.T, b2=(bih2 + bhh2)[None, :],
        wd_t=wd.T, bd=bd[None, :],
    )


def reference_forward(x, params, *, seq_len, in_channels, out_channels, lstm_units):
    """Pure-JAX reference (lax.scan) mirroring the kernel's bf16 weight quantization."""
    B = x.shape[0]
    H = lstm_units
    bf = jnp.bfloat16
    x = x.reshape(B, seq_len, in_channels).astype(jnp.float32)

    def cell(carry, inp, wih_t, whh_t, b):
        h, c = carry
        gates = (jnp.dot(inp.astype(bf), wih_t.astype(bf),
                         preferred_element_type=jnp.float32)
                 + jnp.dot(h.astype(bf), whh_t.astype(bf),
                           preferred_element_type=jnp.float32)
                 + b)
        i = jax.nn.sigmoid(gates[:, 0 * H:1 * H])
        f = jax.nn.sigmoid(gates[:, 1 * H:2 * H])
        g = jnp.tanh(gates[:, 2 * H:3 * H])
        o = jax.nn.sigmoid(gates[:, 3 * H:4 * H])
        c = f * c + i * g
        h = o * jnp.tanh(c)
        return (h, c), h

    def run_lstm(xs, wih_t, whh_t, b):
        init = (jnp.zeros((B, H), jnp.float32), jnp.zeros((B, H), jnp.float32))
        (h, _), ys = lax.scan(
            lambda carry, xt: cell(carry, xt, wih_t, whh_t, b), init,
            jnp.transpose(xs, (1, 0, 2)))
        return jnp.transpose(ys, (1, 0, 2)), h

    y1, _ = run_lstm(x, params["wih1_t"], params["whh1_t"], params["b1"])
    _, h2 = run_lstm(y1, params["wih2_t"], params["whh2_t"], params["b2"])
    return (jnp.dot(h2.astype(bf), params["wd_t"].astype(bf),
                    preferred_element_type=jnp.float32) + params["bd"])


if __name__ == "__main__":
    # Small shapes consistent with the module's forward.
    batch = 2
    seq_len = 8
    in_channels = 4
    out_channels = 3
    lstm_units = 32

    key = jax.random.PRNGKey(0)
    k_x, k_p = jax.random.split(key)
    x = jax.random.normal(k_x, (batch, seq_len, in_channels), jnp.float32)
    params = init_params(k_p, in_channels=in_channels,
                         out_channels=out_channels, lstm_units=lstm_units)

    fwd = functools.partial(lstm_model_forward, seq_len=seq_len,
                            in_channels=in_channels, out_channels=out_channels,
                            lstm_units=lstm_units)
    out = jax.jit(lambda a: fwd(a, params))(x)
    out = jax.block_until_ready(out)

    ref = reference_forward(x, params, seq_len=seq_len, in_channels=in_channels,
                            out_channels=out_channels, lstm_units=lstm_units)
    assert out.shape == (batch, out_channels)
    assert jnp.allclose(out, ref, atol=5e-4, rtol=5e-4), (out, ref)

    print("KERNEL_OK")
</pallas_src>

<mosaic_0001>
module attributes {stable_mosaic.version = 11 : i64} {
  func.func @_lstm_stack_kernel(%arg0: i32, %arg1: memref<2x8x4xf32, #tpu.memory_space<vmem>>, %arg2: memref<68x256xbf16, #tpu.memory_space<vmem>>, %arg3: memref<1x128xf32, #tpu.memory_space<vmem>>, %arg4: memref<32x128xbf16, #tpu.memory_space<vmem>>, %arg5: memref<1x128xf32, #tpu.memory_space<vmem>>, %arg6: memref<32x3xbf16, #tpu.memory_space<vmem>>, %arg7: memref<1x3xf32, #tpu.memory_space<vmem>>, %arg8: memref<2x3xf32, #tpu.memory_space<vmem>>) attributes {dimension_semantics = [#tpu.dimension_semantics<arbitrary>], iteration_bounds = array<i64: 1>, scalar_prefetch = 0 : i64, scratch_operands = 0 : i64, tpu.core_type = #tpu.core_type<tc>, window_params = [{pipeline_mode = #tpu.pipeline_mode<synchronous>, transform_indices = @transform_0, window_bounds = array<i64: 2, 8, 4>}, {pipeline_mode = #tpu.pipeline_mode<synchronous>, transform_indices = @transform_1, window_bounds = array<i64: 68, 256>}, {pipeline_mode = #tpu.pipeline_mode<synchronous>, transform_indices = @transform_2, window_bounds = array<i64: 1, 128>}, {pipeline_mode = #tpu.pipeline_mode<synchronous>, transform_indices = @transform_3, window_bounds = array<i64: 32, 128>}, {pipeline_mode = #tpu.pipeline_mode<synchronous>, transform_indices = @transform_4, window_bounds = array<i64: 1, 128>}, {pipeline_mode = #tpu.pipeline_mode<synchronous>, transform_indices = @transform_5, window_bounds = array<i64: 32, 3>}, {pipeline_mode = #tpu.pipeline_mode<synchronous>, transform_indices = @transform_6, window_bounds = array<i64: 1, 3>}, {pipeline_mode = #tpu.pipeline_mode<synchronous>, transform_indices = @transform_7, window_bounds = array<i64: 2, 3>}]} {
    %c0 = arith.constant 0 : index
    %c0_0 = arith.constant 0 : index
    %0 = vector.load %arg2[%c0, %c0_0] : memref<68x256xbf16, #tpu.memory_space<vmem>>, vector<68x256xbf16>
    %c0_1 = arith.constant 0 : index
    %c0_2 = arith.constant 0 : index
    %1 = vector.load %arg4[%c0_1, %c0_2] : memref<32x128xbf16, #tpu.memory_space<vmem>>, vector<32x128xbf16>
    %c0_3 = arith.constant 0 : index
    %c0_4 = arith.constant 0 : index
    %2 = vector.load %arg6[%c0_3, %c0_4] : memref<32x3xbf16, #tpu.memory_space<vmem>>, vector<32x3xbf16>
    %c0_5 = arith.constant 0 : index
    %c0_6 = arith.constant 0 : index
    %3 = vector.load %arg3[%c0_5, %c0_6] : memref<1x128xf32, #tpu.memory_space<vmem>>, vector<1x128xf32>
    %4 = vector.shape_cast %3 : vector<1x128xf32> to vector<1x128xf32>
    %5 = vector.broadcast %4 : vector<1x128xf32> to vector<2x128xf32>
    %c0_7 = arith.constant 0 : index
    %c0_8 = arith.constant 0 : index
    %6 = vector.load %arg5[%c0_7, %c0_8] : memref<1x128xf32, #tpu.memory_space<vmem>>, vector<1x128xf32>
    %7 = vector.shape_cast %6 : vector<1x128xf32> to vector<1x128xf32>
    %8 = vector.broadcast %7 : vector<1x128xf32> to vector<2x128xf32>
    %c0_9 = arith.constant 0 : index
    %c0_10 = arith.constant 0 : index
    %9 = vector.load %arg7[%c0_9, %c0_10] : memref<1x3xf32, #tpu.memory_space<vmem>>, vector<1x3xf32>
    %cst = arith.constant 0.000000e+00 : f32
    %10 = vector.broadcast %cst : f32 to vector<2x32xf32>
    %cst_11 = arith.constant 0.000000e+00 : f32
    %11 = vector.broadcast %cst_11 : f32 to vector<2x32xf32>
    %cst_12 = arith.constant 0.000000e+00 : f32
    %12 = vector.broadcast %cst_12 : f32 to vector<2x32xf32>
    %cst_13 = arith.constant 0.000000e+00 : f32
    %13 = vector.broadcast %cst_13 : f32 to vector<2x32xf32>
    %c0_14 = arith.constant 0 : index
    %c0_15 = arith.constant 0 : index
    %c0_16 = arith.constant 0 : index
    %14 = vector.load %arg1[%c0_14, %c0_15, %c0_16] : memref<2x8x4xf32, #tpu.memory_space<vmem>>, vector<2x1x4xf32>
    %15 = vector.shape_cast %14 : vector<2x1x4xf32> to vector<2x4xf32>
    %16 = tpu.concatenate %15, %10, %12 in 1 : vector<2x4xf32>, vector<2x32xf32>, vector<2x32xf32> -> vector<2x68xf32>
    %17 = arith.truncf %16 : vector<2x68xf32> to vector<2x68xbf16>
    %cst_17 = arith.constant dense<0.000000e+00> : vector<2x256xf32>
    %18 = tpu.matmul %17, %0, %cst_17 {dimension_numbers = #tpu.dot_dimension_numbers<[1], [0], [0], [1], [0, 0, 1, 1], [], []>} : vector<2x68xbf16>, vector<68x256xbf16>, vector<2x256xf32> -> vector<2x256xf32>
    %19 = vector.extract_strided_slice %18 {offsets = [0, 0], sizes = [2, 128], strides = [1, 1]} : vector<2x256xf32> to vector<2x128xf32>
    %20 = arith.addf %19, %5 : vector<2x128xf32>
    %21 = arith.negf %20 : vector<2x128xf32>
    %22 = math.exp %21 : vector<2x128xf32>
    %cst_18 = arith.constant 1.000000e+00 : f32
    %23 = vector.broadcast %cst_18 : f32 to vector<2x128xf32>
    %24 = arith.addf %23, %22 : vector<2x128xf32>
    %25 = arith.divf %23, %24 : vector<2x128xf32>
    %26 = math.tanh %20 : vector<2x128xf32>
    %27 = vector.extract_strided_slice %25 {offsets = [0, 0], sizes = [2, 32], strides = [1, 1]} : vector<2x128xf32> to vector<2x32xf32>
    %28 = vector.extract_strided_slice %25 {offsets = [0, 32], sizes = [2, 32], strides = [1, 1]} : vector<2x128xf32> to vector<2x32xf32>
    %29 = vector.extract_strided_slice %26 {offsets = [0, 64], sizes = [2, 32], strides = [1, 1]} : vector<2x128xf32> to vector<2x32xf32>
    %30 = vector.extract_strided_slice %25 {offsets = [0, 96], sizes = [2, 32], strides = [1, 1]} : vector<2x128xf32> to vector<2x32xf32>
    %31 = arith.mulf %28, %11 : vector<2x32xf32>
    %32 = arith.mulf %27, %29 : vector<2x32xf32>
    %33 = arith.addf %31, %32 : vector<2x32xf32>
    %34 = math.tanh %33 : vector<2x32xf32>
    %35 = arith.mulf %30, %34 : vector<2x32xf32>
    %36 = arith.truncf %35 : vector<2x32xf32> to vector<2x32xbf16>
    %cst_19 = arith.constant dense<0.000000e+00> : vector<2x128xf32>
    %37 = tpu.matmul %36, %1, %cst_19 {dimension_numbers = #tpu.dot_dimension_numbers<[1], [0], [0], [1], [0, 0, 1, 1], [], []>} : vector<2x32xbf16>, vector<32x128xbf16>, vector<2x128xf32> -> vector<2x128xf32>
    %38 = vector.extract_strided_slice %18 {offsets = [0, 128], sizes = [2, 128], strides = [1, 1]} : vector<2x256xf32> to vector<2x128xf32>
    %39 = arith.addf %37, %38 : vector<2x128xf32>
    %40 = arith.addf %39, %8 : vector<2x128xf32>
    %41 = arith.negf %40 : vector<2x128xf32>
    %42 = math.exp %41 : vector<2x128xf32>
    %cst_20 = arith.constant 1.000000e+00 : f32
    %43 = vector.broadcast %cst_20 : f32 to vector<2x128xf32>
    %44 = arith.addf %43, %42 : vector<2x128xf32>
    %45 = arith.divf %43, %44 : vector<2x128xf32>
    %46 = math.tanh %40 : vector<2x128xf32>
    %47 = vector.extract_strided_slice %45 {offsets = [0, 0], sizes = [2, 32], strides = [1, 1]} : vector<2x128xf32> to vector<2x32xf32>
    %48 = vector.extract_strided_slice %45 {offsets = [0, 32], sizes = [2, 32], strides = [1, 1]} : vector<2x128xf32> to vector<2x32xf32>
    %49 = vector.extract_strided_slice %46 {offsets = [0, 64], sizes = [2, 32], strides = [1, 1]} : vector<2x128xf32> to vector<2x32xf32>
    %50 = vector.extract_strided_slice %45 {offsets = [0, 96], sizes = [2, 32], strides = [1, 1]} : vector<2x128xf32> to vector<2x32xf32>
    %51 = arith.mulf %48, %13 : vector<2x32xf32>
    %52 = arith.mulf %47, %49 : vector<2x32xf32>
    %53 = arith.addf %51, %52 : vector<2x32xf32>
    %54 = math.tanh %53 : vector<2x32xf32>
    %55 = arith.mulf %50, %54 : vector<2x32xf32>
    %c0_21 = arith.constant 0 : index
    %c1 = arith.constant 1 : index
    %c0_22 = arith.constant 0 : index
    %56 = vector.load %arg1[%c0_21, %c1, %c0_22] : memref<2x8x4xf32, #tpu.memory_space<vmem>>, vector<2x1x4xf32>
    %57 = vector.shape_cast %56 : vector<2x1x4xf32> to vector<2x4xf32>
    %58 = tpu.concatenate %57, %35, %55 in 1 : vector<2x4xf32>, vector<2x32xf32>, vector<2x32xf32> -> vector<2x68xf32>
    %59 = arith.truncf %58 : vector<2x68xf32> to vector<2x68xbf16>
    %cst_23 = arith.constant dense<0.000000e+00> : vector<2x256xf32>
    %60 = tpu.matmul %59, %0, %cst_23 {dimension_numbers = #tpu.dot_dimension_numbers<[1], [0], [0], [1], [0, 0, 1, 1], [], []>} : vector<2x68xbf16>, vector<68x256xbf16>, vector<2x256xf32> -> vector<2x256xf32>
    %61 = vector.extract_strided_slice %60 {offsets = [0, 0], sizes = [2, 128], strides = [1, 1]} : vector<2x256xf32> to vector<2x128xf32>
    %62 = arith.addf %61, %5 : vector<2x128xf32>
    %63 = arith.negf %62 : vector<2x128xf32>
    %64 = math.exp %63 : vector<2x128xf32>
    %cst_24 = arith.constant 1.000000e+00 : f32
    %65 = vector.broadcast %cst_24 : f32 to vector<2x128xf32>
    %66 = arith.addf %65, %64 : vector<2x128xf32>
    %67 = arith.divf %65, %66 : vector<2x128xf32>
    %68 = math.tanh %62 : vector<2x128xf32>
    %69 = vector.extract_strided_slice %67 {offsets = [0, 0], sizes = [2, 32], strides = [1, 1]} : vector<2x128xf32> to vector<2x32xf32>
    %70 = vector.extract_strided_slice %67 {offsets = [0, 32], sizes = [2, 32], strides = [1, 1]} : vector<2x128xf32> to vector<2x32xf32>
    %71 = vector.extract_strided_slice %68 {offsets = [0, 64], sizes = [2, 32], strides = [1, 1]} : vector<2x128xf32> to vector<2x32xf32>
    %72 = vector.extract_strided_slice %67 {offsets = [0, 96], sizes = [2, 32], strides = [1, 1]} : vector<2x128xf32> to vector<2x32xf32>
    %73 = arith.mulf %70, %33 : vector<2x32xf32>
    %74 = arith.mulf %69, %71 : vector<2x32xf32>
    %75 = arith.addf %73, %74 : vector<2x32xf32>
    %76 = math.tanh %75 : vector<2x32xf32>
    %77 = arith.mulf %72, %76 : vector<2x32xf32>
    %78 = arith.truncf %77 : vector<2x32xf32> to vector<2x32xbf16>
    %cst_25 = arith.constant dense<0.000000e+00> : vector<2x128xf32>
    %79 = tpu.matmul %78, %1, %cst_25 {dimension_numbers = #tpu.dot_dimension_numbers<[1], [0], [0], [1], [0, 0, 1, 1], [], []>} : vector<2x32xbf16>, vector<32x128xbf16>, vector<2x128xf32> -> vector<2x128xf32>
    %80 = vector.extract_strided_slice %60 {offsets = [0, 128], sizes = [2, 128], strides = [1, 1]} : vector<2x256xf32> to vector<2x128xf32>
    %81 = arith.addf %79, %80 : vector<2x128xf32>
    %82 = arith.addf %81, %8 : vector<2x128xf32>
    %83 = arith.negf %82 : vector<2x128xf32>
    %84 = math.exp %83 : vector<2x128xf32>
    %cst_26 = arith.constant 1.000000e+00 : f32
    %85 = vector.broadcast %cst_26 : f32 to vector<2x128xf32>
    %86 = arith.addf %85, %84 : vector<2x128xf32>
    %87 = arith.divf %85, %86 : vector<2x128xf32>
    %88 = math.tanh %82 : vector<2x128xf32>
    %89 = vector.extract_strided_slice %87 {offsets = [0, 0], sizes = [2, 32], strides = [1, 1]} : vector<2x128xf32> to vector<2x32xf32>
    %90 = vector.extract_strided_slice %87 {offsets = [0, 32], sizes = [2, 32], strides = [1, 1]} : vector<2x128xf32> to vector<2x32xf32>
    %91 = vector.extract_strided_slice %88 {offsets = [0, 64], sizes = [2, 32], strides = [1, 1]} : vector<2x128xf32> to vector<2x32xf32>
    %92 = vector.extract_strided_slice %87 {offsets = [0, 96], sizes = [2, 32], strides = [1, 1]} : vector<2x128xf32> to vector<2x32xf32>
    %93 = arith.mulf %90, %53 : vector<2x32xf32>
    %94 = arith.mulf %89, %91 : vector<2x32xf32>
    %95 = arith.addf %93, %94 : vector<2x32xf32>
    %96 = math.tanh %95 : vector<2x32xf32>
    %97 = arith.mulf %92, %96 : vector<2x32xf32>
    %c0_27 = arith.constant 0 : index
    %c2 = arith.constant 2 : index
    %c0_28 = arith.constant 0 : index
    %98 = vector.load %arg1[%c0_27, %c2, %c0_28] : memref<2x8x4xf32, #tpu.memory_space<vmem>>, vector<2x1x4xf32>
    %99 = vector.shape_cast %98 : vector<2x1x4xf32> to vector<2x4xf32>
    %100 = tpu.concatenate %99, %77, %97 in 1 : vector<2x4xf32>, vector<2x32xf32>, vector<2x32xf32> -> vector<2x68xf32>
    %101 = arith.truncf %100 : vector<2x68xf32> to vector<2x68xbf16>
    %cst_29 = arith.constant dense<0.000000e+00> : vector<2x256xf32>
    %102 = tpu.matmul %101, %0, %cst_29 {dimension_numbers = #tpu.dot_dimension_numbers<[1], [0], [0], [1], [0, 0, 1, 1], [], []>} : vector<2x68xbf16>, vector<68x256xbf16>, vector<2x256xf32> -> vector<2x256xf32>
    %103 = vector.extract_strided_slice %102 {offsets = [0, 0], sizes = [2, 128], strides = [1, 1]} : vector<2x256xf32> to vector<2x128xf32>
    %104 = arith.addf %103, %5 : vector<2x128xf32>
    %105 = arith.negf %104 : vector<2x128xf32>
    %106 = math.exp %105 : vector<2x128xf32>
    %cst_30 = arith.constant 1.000000e+00 : f32
    %107 = vector.broadcast %cst_30 : f32 to vector<2x128xf32>
    %108 = arith.addf %107, %106 : vector<2x128xf32>
    %109 = arith.divf %107, %108 : vector<2x128xf32>
    %110 = math.tanh %104 : vector<2x128xf32>
    %111 = vector.extract_strided_slice %109 {offsets = [0, 0], sizes = [2, 32], strides = [1, 1]} : vector<2x128xf32> to vector<2x32xf32>
    %112 = vector.extract_strided_slice %109 {offsets = [0, 32], sizes = [2, 32], strides = [1, 1]} : vector<2x128xf32> to vector<2x32xf32>
    %113 = vector.extract_strided_slice %110 {offsets = [0, 64], sizes = [2, 32], strides = [1, 1]} : vector<2x128xf32> to vector<2x32xf32>
    %114 = vector.extract_strided_slice %109 {offsets = [0, 96], sizes = [2, 32], strides = [1, 1]} : vector<2x128xf32> to vector<2x32xf32>
    %115 = arith.mulf %112, %75 : vector<2x32xf32>
    %116 = arith.mulf %111, %113 : vector<2x32xf32>
    %117 = arith.addf %115, %116 : vector<2x32xf32>
    %118 = math.tanh %117 : vector<2x32xf32>
    %119 = arith.mulf %114, %118 : vector<2x32xf32>
    %120 = arith.truncf %119 : vector<2x32xf32> to vector<2x32xbf16>
    %cst_31 = arith.constant dense<0.000000e+00> : vector<2x128xf32>
    %121 = tpu.matmul %120, %1, %cst_31 {dimension_numbers = #tpu.dot_dimension_numbers<[1], [0], [0], [1], [0, 0, 1, 1], [], []>} : vector<2x32xbf16>, vector<32x128xbf16>, vector<2x128xf32> -> vector<2x128xf32>
    %122 = vector.extract_strided_slice %102 {offsets = [0, 128], sizes = [2, 128], strides = [1, 1]} : vector<2x256xf32> to vector<2x128xf32>
    %123 = arith.addf %121, %122 : vector<2x128xf32>
    %124 = arith.addf %123, %8 : vector<2x128xf32>
    %125 = arith.negf %124 : vector<2x128xf32>
    %126 = math.exp %125 : vector<2x128xf32>
    %cst_32 = arith.constant 1.000000e+00 : f32
    %127 = vector.broadcast %cst_32 : f32 to vector<2x128xf32>
    %128 = arith.addf %127, %126 : vector<2x128xf32>
    %129 = arith.divf %127, %128 : vector<2x128xf32>
    %130 = math.tanh %124 : vector<2x128xf32>
    %131 = vector.extract_strided_slice %129 {offsets = [0, 0], sizes = [2, 32], strides = [1, 1]} : vector<2x128xf32> to vector<2x32xf32>
    %132 = vector.extract_strided_slice %129 {offsets = [0, 32], sizes = [2, 32], strides = [1, 1]} : vector<2x128xf32> to vector<2x32xf32>
    %133 = vector.extract_strided_slice %130 {offsets = [0, 64], sizes = [2, 32], strides = [1, 1]} : vector<2x128xf32> to vector<2x32xf32>
    %134 = vector.extract_strided_slice %129 {offsets = [0, 96], sizes = [2, 32], strides = [1, 1]} : vector<2x128xf32> to vector<2x32xf32>
    %135 = arith.mulf %132, %95 : vector<2x32xf32>
    %136 = arith.mulf %131, %133 : vector<2x32xf32>
    %137 = arith.addf %135, %136 : vector<2x32xf32>
    %138 = math.tanh %137 : vector<2x32xf32>
    %139 = arith.mulf %134, %138 : vector<2x32xf32>
    %c0_33 = arith.constant 0 : index
    %c3 = arith.constant 3 : index
    %c0_34 = arith.constant 0 : index
    %140 = vector.load %arg1[%c0_33, %c3, %c0_34] : memref<2x8x4xf32, #tpu.memory_space<vmem>>, vector<2x1x4xf32>
    %141 = vector.shape_cast %140 : vector<2x1x4xf32> to vector<2x4xf32>
    %142 = tpu.concatenate %141, %119, %139 in 1 : vector<2x4xf32>, vector<2x32xf32>, vector<2x32xf32> -> vector<2x68xf32>
    %143 = arith.truncf %142 : vector<2x68xf32> to vector<2x68xbf16>
    %cst_35 = arith.constant dense<0.000000e+00> : vector<2x256xf32>
    %144 = tpu.matmul %143, %0, %cst_35 {dimension_numbers = #tpu.dot_dimension_numbers<[1], [0], [0], [1], [0, 0, 1, 1], [], []>} : vector<2x68xbf16>, vector<68x256xbf16>, vector<2x256xf32> -> vector<2x256xf32>
    %145 = vector.extract_strided_slice %144 {offsets = [0, 0], sizes = [2, 128], strides = [1, 1]} : vector<2x256xf32> to vector<2x128xf32>
    %146 = arith.addf %145, %5 : vector<2x128xf32>
    %147 = arith.negf %146 : vector<2x128xf32>
    %148 = math.exp %147 : vector<2x128xf32>
    %cst_36 = arith.constant 1.000000e+00 : f32
    %149 = vector.broadcast %cst_36 : f32 to vector<2x128xf32>
    %150 = arith.addf %149, %148 : vector<2x128xf32>
    %151 = arith.divf %149, %150 : vector<2x128xf32>
    %152 = math.tanh %146 : vector<2x128xf32>
    %153 = vector.extract_strided_slice %151 {offsets = [0, 0], sizes = [2, 32], strides = [1, 1]} : vector<2x128xf32> to vector<2x32xf32>
    %154 = vector.extract_strided_slice %151 {offsets = [0, 32], sizes = [2, 32], strides = [1, 1]} : vector<2x128xf32> to vector<2x32xf32>
    %155 = vector.extract_strided_slice %152 {offsets = [0, 64], sizes = [2, 32], strides = [1, 1]} : vector<2x128xf32> to vector<2x32xf32>
    %156 = vector.extract_strided_slice %151 {offsets = [0, 96], sizes = [2, 32], strides = [1, 1]} : vector<2x128xf32> to vector<2x32xf32>
    %157 = arith.mulf %154, %117 : vector<2x32xf32>
    %158 = arith.mulf %153, %155 : vector<2x32xf32>
    %159 = arith.addf %157, %158 : vector<2x32xf32>
    %160 = math.tanh %159 : vector<2x32xf32>
    %161 = arith.mulf %156, %160 : vector<2x32xf32>
    %162 = arith.truncf %161 : vector<2x32xf32> to vector<2x32xbf16>
    %cst_37 = arith.constant dense<0.000000e+00> : vector<2x128xf32>
    %163 = tpu.matmul %162, %1, %cst_37 {dimension_numbers = #tpu.dot_dimension_numbers<[1], [0], [0], [1], [0, 0, 1, 1], [], []>} : vector<2x32xbf16>, vector<32x128xbf16>, vector<2x128xf32> -> vector<2x128xf32>
    %164 = vector.extract_strided_slice %144 {offsets = [0, 128], sizes = [2, 128], strides = [1, 1]} : vector<2x256xf32> to vector<2x128xf32>
    %165 = arith.addf %163, %164 : vector<2x128xf32>
    %166 = arith.addf %165, %8 : vector<2x128xf32>
    %167 = arith.negf %166 : vector<2x128xf32>
    %168 = math.exp %167 : vector<2x128xf32>
    %cst_38 = arith.constant 1.000000e+00 : f32
    %169 = vector.broadcast %cst_38 : f32 to vector<2x128xf32>
    %170 = arith.addf %169, %168 : vector<2x128xf32>
    %171 = arith.divf %169, %170 : vector<2x128xf32>
    %172 = math.tanh %166 : vector<2x128xf32>
    %173 = vector.extract_strided_slice %171 {offsets = [0, 0], sizes = [2, 32], strides = [1, 1]} : vector<2x128xf32> to vector<2x32xf32>
    %174 = vector.extract_strided_slice %171 {offsets = [0, 32], sizes = [2, 32], strides = [1, 1]} : vector<2x128xf32> to vector<2x32xf32>
    %175 = vector.extract_strided_slice %172 {offsets = [0, 64], sizes = [2, 32], strides = [1, 1]} : vector<2x128xf32> to vector<2x32xf32>
    %176 = vector.extract_strided_slice %171 {offsets = [0, 96], sizes = [2, 32], strides = [1, 1]} : vector<2x128xf32> to vector<2x32xf32>
    %177 = arith.mulf %174, %137 : vector<2x32xf32>
    %178 = arith.mulf %173, %175 : vector<2x32xf32>
    %179 = arith.addf %177, %178 : vector<2x32xf32>
    %180 = math.tanh %179 : vector<2x32xf32>
    %181 = arith.mulf %176, %180 : vector<2x32xf32>
    %c0_39 = arith.constant 0 : index
    %c4 = arith.constant 4 : index
    %c0_40 = arith.constant 0 : index
    %182 = vector.load %arg1[%c0_39, %c4, %c0_40] : memref<2x8x4xf32, #tpu.memory_space<vmem>>, vector<2x1x4xf32>
    %183 = vector.shape_cast %182 : vector<2x1x4xf32> to vector<2x4xf32>
    %184 = tpu.concatenate %183, %161, %181 in 1 : vector<2x4xf32>, vector<2x32xf32>, vector<2x32xf32> -> vector<2x68xf32>
    %185 = arith.truncf %184 : vector<2x68xf32> to vector<2x68xbf16>
    %cst_41 = arith.constant dense<0.000000e+00> : vector<2x256xf32>
    %186 = tpu.matmul %185, %0, %cst_41 {dimension_numbers = #tpu.dot_dimension_numbers<[1], [0], [0], [1], [0, 0, 1, 1], [], []>} : vector<2x68xbf16>, vector<68x256xbf16>, vector<2x256xf32> -> vector<2x256xf32>
    %187 = vector.extract_strided_slice %186 {offsets = [0, 0], sizes = [2, 128], strides = [1, 1]} : vector<2x256xf32> to vector<2x128xf32>
    %188 = arith.addf %187, %5 : vector<2x128xf32>
    %189 = arith.negf %188 : vector<2x128xf32>
    %190 = math.exp %189 : vector<2x128xf32>
    %cst_42 = arith.constant 1.000000e+00 : f32
    %191 = vector.broadcast %cst_42 : f32 to vector<2x128xf32>
    %192 = arith.addf %191, %190 : vector<2x128xf32>
    %193 = arith.divf %191, %192 : vector<2x128xf32>
    %194 = math.tanh %188 : vector<2x128xf32>
    %195 = vector.extract_strided_slice %193 {offsets = [0, 0], sizes = [2, 32], strides = [1, 1]} : vector<2x128xf32> to vector<2x32xf32>
    %196 = vector.extract_strided_slice %193 {offsets = [0, 32], sizes = [2, 32], strides = [1, 1]} : vector<2x128xf32> to vector<2x32xf32>
    %197 = vector.extract_strided_slice %194 {offsets = [0, 64], sizes = [2, 32], strides = [1, 1]} : vector<2x128xf32> to vector<2x32xf32>
    %198 = vector.extract_strided_slice %193 {offsets = [0, 96], sizes = [2, 32], strides = [1, 1]} : vector<2x128xf32> to vector<2x32xf32>
    %199 = arith.mulf %196, %159 : vector<2x32xf32>
    %200 = arith.mulf %195, %197 : vector<2x32xf32>
    %201 = arith.addf %199, %200 : vector<2x32xf32>
    %202 = math.tanh %201 : vector<2x32xf32>
    %203 = arith.mulf %198, %202 : vector<2x32xf32>
    %204 = arith.truncf %203 : vector<2x32xf32> to vector<2x32xbf16>
    %cst_43 = arith.constant dense<0.000000e+00> : vector<2x128xf32>
    %205 = tpu.matmul %204, %1, %cst_43 {dimension_numbers = #tpu.dot_dimension_numbers<[1], [0], [0], [1], [0, 0, 1, 1], [], []>} : vector<2x32xbf16>, vector<32x128xbf16>, vector<2x128xf32> -> vector<2x128xf32>
    %206 = vector.extract_strided_slice %186 {offsets = [0, 128], sizes = [2, 128], strides = [1, 1]} : vector<2x256xf32> to vector<2x128xf32>
    %207 = arith.addf %205, %206 : vector<2x128xf32>
    %208 = arith.addf %207, %8 : vector<2x128xf32>
    %209 = arith.negf %208 : vector<2x128xf32>
    %210 = math.exp %209 : vector<2x128xf32>
    %cst_44 = arith.constant 1.000000e+00 : f32
    %211 = vector.broadcast %cst_44 : f32 to vector<2x128xf32>
    %212 = arith.addf %211, %210 : vector<2x128xf32>
    %213 = arith.divf %211, %212 : vector<2x128xf32>
    %214 = math.tanh %208 : vector<2x128xf32>
    %215 = vector.extract_strided_slice %213 {offsets = [0, 0], sizes = [2, 32], strides = [1, 1]} : vector<2x128xf32> to vector<2x32xf32>
    %216 = vector.extract_strided_slice %213 {offsets = [0, 32], sizes = [2, 32], strides = [1, 1]} : vector<2x128xf32> to vector<2x32xf32>
    %217 = vector.extract_strided_slice %214 {offsets = [0, 64], sizes = [2, 32], strides = [1, 1]} : vector<2x128xf32> to vector<2x32xf32>
    %218 = vector.extract_strided_slice %213 {offsets = [0, 96], sizes = [2, 32], strides = [1, 1]} : vector<2x128xf32> to vector<2x32xf32>
    %219 = arith.mulf %216, %179 : vector<2x32xf32>
    %220 = arith.mulf %215, %217 : vector<2x32xf32>
    %221 = arith.addf %219, %220 : vector<2x32xf32>
    %222 = math.tanh %221 : vector<2x32xf32>
    %223 = arith.mulf %218, %222 : vector<2x32xf32>
    %c0_45 = arith.constant 0 : index
    %c5 = arith.constant 5 : index
    %c0_46 = arith.constant 0 : index
    %224 = vector.load %arg1[%c0_45, %c5, %c0_46] : memref<2x8x4xf32, #tpu.memory_space<vmem>>, vector<2x1x4xf32>
    %225 = vector.shape_cast %224 : vector<2x1x4xf32> to vector<2x4xf32>
    %226 = tpu.concatenate %225, %203, %223 in 1 : vector<2x4xf32>, vector<2x32xf32>, vector<2x32xf32> -> vector<2x68xf32>
    %227 = arith.truncf %226 : vector<2x68xf32> to vector<2x68xbf16>
    %cst_47 = arith.constant dense<0.000000e+00> : vector<2x256xf32>
    %228 = tpu.matmul %227, %0, %cst_47 {dimension_numbers = #tpu.dot_dimension_numbers<[1], [0], [0], [1], [0, 0, 1, 1], [], []>} : vector<2x68xbf16>, vector<68x256xbf16>, vector<2x256xf32> -> vector<2x256xf32>
    %229 = vector.extract_strided_slice %228 {offsets = [0, 0], sizes = [2, 128], strides = [1, 1]} : vector<2x256xf32> to vector<2x128xf32>
    %230 = arith.addf %229, %5 : vector<2x128xf32>
    %231 = arith.negf %230 : vector<2x128xf32>
    %232 = math.exp %231 : vector<2x128xf32>
    %cst_48 = arith.constant 1.000000e+00 : f32
    %233 = vector.broadcast %cst_48 : f32 to vector<2x128xf32>
    %234 = arith.addf %233, %232 : vector<2x128xf32>
    %235 = arith.divf %233, %234 : vector<2x128xf32>
    %236 = math.tanh %230 : vector<2x128xf32>
    %237 = vector.extract_strided_slice %235 {offsets = [0, 0], sizes = [2, 32], strides = [1, 1]} : vector<2x128xf32> to vector<2x32xf32>
    %238 = vector.extract_strided_slice %235 {offsets = [0, 32], sizes = [2, 32], strides = [1, 1]} : vector<2x128xf32> to vector<2x32xf32>
    %239 = vector.extract_strided_slice %236 {offsets = [0, 64], sizes = [2, 32], strides = [1, 1]} : vector<2x128xf32> to vector<2x32xf32>
    %240 = vector.extract_strided_slice %235 {offsets = [0, 96], sizes = [2, 32], strides = [1, 1]} : vector<2x128xf32> to vector<2x32xf32>
    %241 = arith.mulf %238, %201 : vector<2x32xf32>
    %242 = arith.mulf %237, %239 : vector<2x32xf32>
    %243 = arith.addf %241, %242 : vector<2x32xf32>
    %244 = math.tanh %243 : vector<2x32xf32>
    %245 = arith.mulf %240, %244 : vector<2x32xf32>
    %246 = arith.truncf %245 : vector<2x32xf32> to vector<2x32xbf16>
    %cst_49 = arith.constant dense<0.000000e+00> : vector<2x128xf32>
    %247 = tpu.matmul %246, %1, %cst_49 {dimension_numbers = #tpu.dot_dimension_numbers<[1], [0], [0], [1], [0, 0, 1, 1], [], []>} : vector<2x32xbf16>, vector<32x128xbf16>, vector<2x128xf32> -> vector<2x128xf32>
    %248 = vector.extract_strided_slice %228 {offsets = [0, 128], sizes = [2, 128], strides = [1, 1]} : vector<2x256xf32> to vector<2x128xf32>
    %249 = arith.addf %247, %248 : vector<2x128xf32>
    %250 = arith.addf %249, %8 : vector<2x128xf32>
    %251 = arith.negf %250 : vector<2x128xf32>
    %252 = math.exp %251 : vector<2x128xf32>
    %cst_50 = arith.constant 1.000000e+00 : f32
    %253 = vector.broadcast %cst_50 : f32 to vector<2x128xf32>
    %254 = arith.addf %253, %252 : vector<2x128xf32>
    %255 = arith.divf %253, %254 : vector<2x128xf32>
    %256 = math.tanh %250 : vector<2x128xf32>
    %257 = vector.extract_strided_slice %255 {offsets = [0, 0], sizes = [2, 32], strides = [1, 1]} : vector<2x128xf32> to vector<2x32xf32>
    %258 = vector.extract_strided_slice %255 {offsets = [0, 32], sizes = [2, 32], strides = [1, 1]} : vector<2x128xf32> to vector<2x32xf32>
    %259 = vector.extract_strided_slice %256 {offsets = [0, 64], sizes = [2, 32], strides = [1, 1]} : vector<2x128xf32> to vector<2x32xf32>
    %260 = vector.extract_strided_slice %255 {offsets = [0, 96], sizes = [2, 32], strides = [1, 1]} : vector<2x128xf32> to vector<2x32xf32>
    %261 = arith.mulf %258, %221 : vector<2x32xf32>
    %262 = arith.mulf %257, %259 : vector<2x32xf32>
    %263 = arith.addf %261, %262 : vector<2x32xf32>
    %264 = math.tanh %263 : vector<2x32xf32>
    %265 = arith.mulf %260, %264 : vector<2x32xf32>
    %c0_51 = arith.constant 0 : index
    %c6 = arith.constant 6 : index
    %c0_52 = arith.constant 0 : index
    %266 = vector.load %arg1[%c0_51, %c6, %c0_52] : memref<2x8x4xf32, #tpu.memory_space<vmem>>, vector<2x1x4xf32>
    %267 = vector.shape_cast %266 : vector<2x1x4xf32> to vector<2x4xf32>
    %268 = tpu.concatenate %267, %245, %265 in 1 : vector<2x4xf32>, vector<2x32xf32>, vector<2x32xf32> -> vector<2x68xf32>
    %269 = arith.truncf %268 : vector<2x68xf32> to vector<2x68xbf16>
    %cst_53 = arith.constant dense<0.000000e+00> : vector<2x256xf32>
    %270 = tpu.matmul %269, %0, %cst_53 {dimension_numbers = #tpu.dot_dimension_numbers<[1], [0], [0], [1], [0, 0, 1, 1], [], []>} : vector<2x68xbf16>, vector<68x256xbf16>, vector<2x256xf32> -> vector<2x256xf32>
    %271 = vector.extract_strided_slice %270 {offsets = [0, 0], sizes = [2, 128], strides = [1, 1]} : vector<2x256xf32> to vector<2x128xf32>
    %272 = arith.addf %271, %5 : vector<2x128xf32>
    %273 = arith.negf %272 : vector<2x128xf32>
    %274 = math.exp %273 : vector<2x128xf32>
    %cst_54 = arith.constant 1.000000e+00 : f32
    %275 = vector.broadcast %cst_54 : f32 to vector<2x128xf32>
    %276 = arith.addf %275, %274 : vector<2x128xf32>
    %277 = arith.divf %275, %276 : vector<2x128xf32>
    %278 = math.tanh %272 : vector<2x128xf32>
    %279 = vector.extract_strided_slice %277 {offsets = [0, 0], sizes = [2, 32], strides = [1, 1]} : vector<2x128xf32> to vector<2x32xf32>
    %280 = vector.extract_strided_slice %277 {offsets = [0, 32], sizes = [2, 32], strides = [1, 1]} : vector<2x128xf32> to vector<2x32xf32>
    %281 = vector.extract_strided_slice %278 {offsets = [0, 64], sizes = [2, 32], strides = [1, 1]} : vector<2x128xf32> to vector<2x32xf32>
    %282 = vector.extract_strided_slice %277 {offsets = [0, 96], sizes = [2, 32], strides = [1, 1]} : vector<2x128xf32> to vector<2x32xf32>
    %283 = arith.mulf %280, %243 : vector<2x32xf32>
    %284 = arith.mulf %279, %281 : vector<2x32xf32>
    %285 = arith.addf %283, %284 : vector<2x32xf32>
    %286 = math.tanh %285 : vector<2x32xf32>
    %287 = arith.mulf %282, %286 : vector<2x32xf32>
    %288 = arith.truncf %287 : vector<2x32xf32> to vector<2x32xbf16>
    %cst_55 = arith.constant dense<0.000000e+00> : vector<2x128xf32>
    %289 = tpu.matmul %288, %1, %cst_55 {dimension_numbers = #tpu.dot_dimension_numbers<[1], [0], [0], [1], [0, 0, 1, 1], [], []>} : vector<2x32xbf16>, vector<32x128xbf16>, vector<2x128xf32> -> vector<2x128xf32>
    %290 = vector.extract_strided_slice %270 {offsets = [0, 128], sizes = [2, 128], strides = [1, 1]} : vector<2x256xf32> to vector<2x128xf32>
    %291 = arith.addf %289, %290 : vector<2x128xf32>
    %292 = arith.addf %291, %8 : vector<2x128xf32>
    %293 = arith.negf %292 : vector<2x128xf32>
    %294 = math.exp %293 : vector<2x128xf32>
    %cst_56 = arith.constant 1.000000e+00 : f32
    %295 = vector.broadcast %cst_56 : f32 to vector<2x128xf32>
    %296 = arith.addf %295, %294 : vector<2x128xf32>
    %297 = arith.divf %295, %296 : vector<2x128xf32>
    %298 = math.tanh %292 : vector<2x128xf32>
    %299 = vector.extract_strided_slice %297 {offsets = [0, 0], sizes = [2, 32], strides = [1, 1]} : vector<2x128xf32> to vector<2x32xf32>
    %300 = vector.extract_strided_slice %297 {offsets = [0, 32], sizes = [2, 32], strides = [1, 1]} : vector<2x128xf32> to vector<2x32xf32>
    %301 = vector.extract_strided_slice %298 {offsets = [0, 64], sizes = [2, 32], strides = [1, 1]} : vector<2x128xf32> to vector<2x32xf32>
    %302 = vector.extract_strided_slice %297 {offsets = [0, 96], sizes = [2, 32], strides = [1, 1]} : vector<2x128xf32> to vector<2x32xf32>
    %303 = arith.mulf %300, %263 : vector<2x32xf32>
    %304 = arith.mulf %299, %301 : vector<2x32xf32>
    %305 = arith.addf %303, %304 : vector<2x32xf32>
    %306 = math.tanh %305 : vector<2x32xf32>
    %307 = arith.mulf %302, %306 : vector<2x32xf32>
    %c0_57 = arith.constant 0 : index
    %c7 = arith.constant 7 : index
    %c0_58 = arith.constant 0 : index
    %308 = vector.load %arg1[%c0_57, %c7, %c0_58] : memref<2x8x4xf32, #tpu.memory_space<vmem>>, vector<2x1x4xf32>
    %309 = vector.shape_cast %308 : vector<2x1x4xf32> to vector<2x4xf32>
    %310 = tpu.concatenate %309, %287, %307 in 1 : vector<2x4xf32>, vector<2x32xf32>, vector<2x32xf32> -> vector<2x68xf32>
    %311 = arith.truncf %310 : vector<2x68xf32> to vector<2x68xbf16>
    %cst_59 = arith.constant dense<0.000000e+00> : vector<2x256xf32>
    %312 = tpu.matmul %311, %0, %cst_59 {dimension_numbers = #tpu.dot_dimension_numbers<[1], [0], [0], [1], [0, 0, 1, 1], [], []>} : vector<2x68xbf16>, vector<68x256xbf16>, vector<2x256xf32> -> vector<2x256xf32>
    %313 = vector.extract_strided_slice %312 {offsets = [0, 0], sizes = [2, 128], strides = [1, 1]} : vector<2x256xf32> to vector<2x128xf32>
    %314 = arith.addf %313, %5 : vector<2x128xf32>
    %315 = arith.negf %314 : vector<2x128xf32>
    %316 = math.exp %315 : vector<2x128xf32>
    %cst_60 = arith.constant 1.000000e+00 : f32
    %317 = vector.broadcast %cst_60 : f32 to vector<2x128xf32>
    %318 = arith.addf %317, %316 : vector<2x128xf32>
    %319 = arith.divf %317, %318 : vector<2x128xf32>
    %320 = math.tanh %314 : vector<2x128xf32>
    %321 = vector.extract_strided_slice %319 {offsets = [0, 0], sizes = [2, 32], strides = [1, 1]} : vector<2x128xf32> to vector<2x32xf32>
    %322 = vector.extract_strided_slice %319 {offsets = [0, 32], sizes = [2, 32], strides = [1, 1]} : vector<2x128xf32> to vector<2x32xf32>
    %323 = vector.extract_strided_slice %320 {offsets = [0, 64], sizes = [2, 32], strides = [1, 1]} : vector<2x128xf32> to vector<2x32xf32>
    %324 = vector.extract_strided_slice %319 {offsets = [0, 96], sizes = [2, 32], strides = [1, 1]} : vector<2x128xf32> to vector<2x32xf32>
    %325 = arith.mulf %322, %285 : vector<2x32xf32>
    %326 = arith.mulf %321, %323 : vector<2x32xf32>
    %327 = arith.addf %325, %326 : vector<2x32xf32>
    %328 = math.tanh %327 : vector<2x32xf32>
    %329 = arith.mulf %324, %328 : vector<2x32xf32>
    %330 = arith.truncf %329 : vector<2x32xf32> to vector<2x32xbf16>
    %cst_61 = arith.constant dense<0.000000e+00> : vector<2x128xf32>
    %331 = tpu.matmul %330, %1, %cst_61 {dimension_numbers = #tpu.dot_dimension_numbers<[1], [0], [0], [1], [0, 0, 1, 1], [], []>} : vector<2x32xbf16>, vector<32x128xbf16>, vector<2x128xf32> -> vector<2x128xf32>
    %332 = vector.extract_strided_slice %312 {offsets = [0, 128], sizes = [2, 128], strides = [1, 1]} : vector<2x256xf32> to vector<2x128xf32>
    %333 = arith.addf %331, %332 : vector<2x128xf32>
    %334 = arith.addf %333, %8 : vector<2x128xf32>
    %335 = arith.negf %334 : vector<2x128xf32>
    %336 = math.exp %335 : vector<2x128xf32>
    %cst_62 = arith.constant 1.000000e+00 : f32
    %337 = vector.broadcast %cst_62 : f32 to vector<2x128xf32>
    %338 = arith.addf %337, %336 : vector<2x128xf32>
    %339 = arith.divf %337, %338 : vector<2x128xf32>
    %340 = math.tanh %334 : vector<2x128xf32>
    %341 = vector.extract_strided_slice %339 {offsets = [0, 0], sizes = [2, 32], strides = [1, 1]} : vector<2x128xf32> to vector<2x32xf32>
    %342 = vector.extract_strided_slice %339 {offsets = [0, 32], sizes = [2, 32], strides = [1, 1]} : vector<2x128xf32> to vector<2x32xf32>
    %343 = vector.extract_strided_slice %340 {offsets = [0, 64], sizes = [2, 32], strides = [1, 1]} : vector<2x128xf32> to vector<2x32xf32>
    %344 = vector.extract_strided_slice %339 {offsets = [0, 96], sizes = [2, 32], strides = [1, 1]} : vector<2x128xf32> to vector<2x32xf32>
    %345 = arith.mulf %342, %305 : vector<2x32xf32>
    %346 = arith.mulf %341, %343 : vector<2x32xf32>
    %347 = arith.addf %345, %346 : vector<2x32xf32>
    %348 = math.tanh %347 : vector<2x32xf32>
    %349 = arith.mulf %344, %348 : vector<2x32xf32>
    %350 = arith.truncf %349 : vector<2x32xf32> to vector<2x32xbf16>
    %cst_63 = arith.constant dense<0.000000e+00> : vector<2x3xf32>
    %351 = tpu.matmul %350, %2, %cst_63 {dimension_numbers = #tpu.dot_dimension_numbers<[1], [0], [0], [1], [0, 0, 1, 1], [], []>} : vector<2x32xbf16>, vector<32x3xbf16>, vector<2x3xf32> -> vector<2x3xf32>
    %352 = vector.broadcast %9 : vector<1x3xf32> to vector<2x3xf32>
    %353 = arith.addf %351, %352 : vector<2x3xf32>
    %c0_64 = arith.constant 0 : index
    %c0_65 = arith.constant 0 : index
    %354 = vector.load %arg8[%c0_64, %c0_65] : memref<2x3xf32, #tpu.memory_space<vmem>>, vector<2x3xf32>
    tpu.vector_store %arg8[%c0_64, %c0_65], %353 {strides = array<i32>} : memref<2x3xf32, #tpu.memory_space<vmem>>, vector<2x3xf32>,
    return
  }
  func.func @transform_0(%arg0: i32) -> (i32, i32, i32) {
    %c0_i32 = arith.constant 0 : i32
    %c0_i32_0 = arith.constant 0 : i32
    %c0_i32_1 = arith.constant 0 : i32
    %c0_i32_2 = arith.constant 0 : i32
    return %c0_i32, %c0_i32_0, %c0_i32_1 : i32, i32, i32
  }
  func.func @transform_1(%arg0: i32) -> (i32, i32) {
    %c0_i32 = arith.constant 0 : i32
    %c0_i32_0 = arith.constant 0 : i32
    %c0_i32_1 = arith.constant 0 : i32
    return %c0_i32, %c0_i32_0 : i32, i32
  }
  func.func @transform_2(%arg0: i32) -> (i32, i32) {
    %c0_i32 = arith.constant 0 : i32
    %c0_i32_0 = arith.constant 0 : i32
    %c0_i32_1 = arith.constant 0 : i32
    return %c0_i32, %c0_i32_0 : i32, i32
  }
  func.func @transform_3(%arg0: i32) -> (i32, i32) {
    %c0_i32 = arith.constant 0 : i32
    %c0_i32_0 = arith.constant 0 : i32
    %c0_i32_1 = arith.constant 0 : i32
    return %c0_i32, %c0_i32_0 : i32, i32
  }
  func.func @transform_4(%arg0: i32) -> (i32, i32) {
    %c0_i32 = arith.constant 0 : i32
    %c0_i32_0 = arith.constant 0 : i32
    %c0_i32_1 = arith.constant 0 : i32
    return %c0_i32, %c0_i32_0 : i32, i32
  }
  func.func @transform_5(%arg0: i32) -> (i32, i32) {
    %c0_i32 = arith.constant 0 : i32
    %c0_i32_0 = arith.constant 0 : i32
    %c0_i32_1 = arith.constant 0 : i32
    return %c0_i32, %c0_i32_0 : i32, i32
  }
  func.func @transform_6(%arg0: i32) -> (i32, i32) {
    %c0_i32 = arith.constant 0 : i32
    %c0_i32_0 = arith.constant 0 : i32
    %c0_i32_1 = arith.constant 0 : i32
    return %c0_i32, %c0_i32_0 : i32, i32
  }
  func.func @transform_7(%arg0: i32) -> (i32, i32) {
    %c0_i32 = arith.constant 0 : i32
    %c0_i32_0 = arith.constant 0 : i32
    %c0_i32_1 = arith.constant 0 : i32
    return %c0_i32, %c0_i32_0 : i32, i32
  }
}

</mosaic_0001>

<llo_original>
// kernel: _lambda_.1
$region0: #{_lambda_.1}
  #allocation0 [shape = 'u32[]', space=smem, size = 0x4, offset = 0x4, fixed_abs, tag = 'smem constant byte address 0x4 - core index']
  #allocation1 [shape = 'u32[72,128]{1,0:T(1,128)}', space=vmem, size = 0x9000, scoped, tag = 'internal scratch']
  %s0 = inlined_call_operand.vmem [shape: f32[2,8,4], index: 0, kind: input, shape index: {}]
  %s1 = inlined_call_operand.hbm [shape: bf16[68,256], index: 1, kind: input, shape index: {}]
  %s2 = inlined_call_operand.vmem [shape: f32[1,128], index: 2, kind: input, shape index: {}]
  %s3 = inlined_call_operand.hbm [shape: bf16[32,128], index: 3, kind: input, shape index: {}]
  %s4 = inlined_call_operand.vmem [shape: f32[1,128], index: 4, kind: input, shape index: {}]
  %s5 = inlined_call_operand.vmem [shape: bf16[32,3], index: 5, kind: input, shape index: {}]
  %s6 = inlined_call_operand.vmem [shape: f32[1,3], index: 6, kind: input, shape index: {}]
  %s7 = inlined_call_operand.hbm [shape: f32[2,3], index: 7, kind: output, shape index: {}]
  %s8 = sld [smem:[#allocation0]]
  $region46: #{_lambda_.1} parent=0
    _
  %s10 = ssub.s32 1, %s8
  %s11 = scalar_select 0, %s10, %s8
  $region1: #{_lambda_.1} parent=0
    #allocation2 [shape = 'u8[36864]{0}', space=vmem, size = 0x9000, scoped, tag = 'input window, operand 1, single buffered']
    #allocation3 [shape = 's32[1]{0}', space=sflag, size = 0x4, scoped, tag = 'scoped memory for _lambda_.1']
    #allocation4 [shape = 's32[1]{0}', space=sflag, size = 0x4, scoped, tag = 'scoped memory for _lambda_.1']
    #allocation5 [shape = 'u8[8192]{0}', space=vmem, size = 0x2000, scoped, tag = 'input window, operand 3, single buffered']
    #allocation6 [shape = 's32[1]{0}', space=sflag, size = 0x4, scoped, tag = 'scoped memory for _lambda_.1']
    #allocation7 [shape = 'u8[1024]{0}', space=vmem, size = 0x400, scoped, tag = 'output window, operand 0, single buffered']
    %12 = vsyncpa [#allocation3], 0
    %13 = vsyncpa [#allocation6], 0
    %14 = vsyncpa [#allocation4], 0
    // Predicated region
    $region2: #{_lambda_.1} parent=1 // pred_check
      _
    $region3: #{_lambda_.1} parent=1 // pred_check_branch
      %16 = sbr.rel (0) target = $region5
    $region4: #{_lambda_.1} parent=1 // pred_region
      _
    $region5: #{_lambda_.1} parent=1 // pred_fallthru
      _
    // Predicated region
    $region6: #{_lambda_.1} parent=1 // pred_check
      _
    $region7: #{_lambda_.1} parent=1 // pred_check_branch
      %18 = sbr.rel (0) target = $region9
    $region8: #{_lambda_.1} parent=1 // pred_region
      %20 = vsyncadd [#allocation3], 0
      %s21 = sshll.u32 %s1, 4
      %s22 = int_to_ptr.hbm [resolvable:$true] %s21
      %s23 = sshll.u32 [#allocation2], 4
      %s24 = int_to_ptr.vmem [resolvable:$true] %s23
      %29 = dma.hbm_to_vmem [thread:$0]  %s22, 1152, %s24, [#allocation3], 128, 128, 8
    $region9: #{_lambda_.1} parent=1 // pred_fallthru
      _
    // Predicated region
    $region10: #{_lambda_.1} parent=1 // pred_check
      _
    $region11: #{_lambda_.1} parent=1 // pred_check_branch
      %31 = sbr.rel (0) target = $region13
    $region12: #{_lambda_.1} parent=1 // pred_region
      _
    $region13: #{_lambda_.1} parent=1 // pred_fallthru
      _
    // Predicated region
    $region14: #{_lambda_.1} parent=1 // pred_check
      _
    $region15: #{_lambda_.1} parent=1 // pred_check_branch
      %33 = sbr.rel (0) target = $region17
    $region16: #{_lambda_.1} parent=1 // pred_region
      %35 = vsyncadd [#allocation6], 0
      %s36 = sshll.u32 %s3, 4
      %s37 = int_to_ptr.hbm [resolvable:$true] %s36
      %s38 = sshll.u32 [#allocation5], 4
      %s39 = int_to_ptr.vmem [resolvable:$true] %s38
      %44 = dma.hbm_to_vmem [thread:$0]  %s37, 256, %s39, [#allocation6], 64, 64, 4
    $region17: #{_lambda_.1} parent=1 // pred_fallthru
      _
    // Predicated region
    $region18: #{_lambda_.1} parent=1 // pred_check
      _
    $region19: #{_lambda_.1} parent=1 // pred_check_branch
      %46 = sbr.rel (0) target = $region21
    $region20: #{_lambda_.1} parent=1 // pred_region
      _
    $region21: #{_lambda_.1} parent=1 // pred_fallthru
      _
    // Predicated region
    $region22: #{_lambda_.1} parent=1 // pred_check
      _
    $region23: #{_lambda_.1} parent=1 // pred_check_branch
      %48 = sbr.rel (0) target = $region25
    $region24: #{_lambda_.1} parent=1 // pred_region
      _
    $region25: #{_lambda_.1} parent=1 // pred_fallthru
      _
    // Predicated region
    $region26: #{_lambda_.1} parent=1 // pred_check
      _
    $region27: #{_lambda_.1} parent=1 // pred_check_branch
      %50 = sbr.rel (0) target = $region29
    $region28: #{_lambda_.1} parent=1 // pred_region
      _
    $region29: #{_lambda_.1} parent=1 // pred_fallthru
      _
    // Predicated region
    $region30: #{_lambda_.1} parent=1 // pred_check
      _
    $region31: #{_lambda_.1} parent=1 // pred_check_branch
      %52 = sbr.rel (0) target = $region33
    $region32: #{_lambda_.1} parent=1 // pred_region
      %54 = dma.done [#allocation3], 1152
    $region33: #{_lambda_.1} parent=1 // pred_fallthru
      _
    // Predicated region
    $region34: #{_lambda_.1} parent=1 // pred_check
      _
    $region35: #{_lambda_.1} parent=1 // pred_check_branch
      %56 = sbr.rel (0) target = $region37
    $region36: #{_lambda_.1} parent=1 // pred_region
      %58 = dma.done [#allocation6], 256
    $region37: #{_lambda_.1} parent=1 // pred_fallthru
      _
    %v60 = vld [vmem:[#allocation2] sm:$0xff]
    %v61 = vld [vmem:[#allocation2 + $0x8] sm:$0xff]
    %v62 = vld [vmem:[#allocation2 + $0x10] sm:$0xff]
    %v63 = vld [vmem:[#allocation2 + $0x18] sm:$0xff]
    %v64 = vld [vmem:[#allocation2 + $0x20] sm:$0xff]
    %v65 = vld [vmem:[#allocation2 + $0x28] sm:$0xff]
    %v66 = vld [vmem:[#allocation2 + $0x30] sm:$0xff]
    %v67 = vld [vmem:[#allocation2 + $0x38] sm:$0xff]
    %v68 = vld [vmem:[#allocation2 + $0x40] sm:$0x33]
    %v69 = vld [vmem:[#allocation5] sm:$0xf]
    %v70 = vld [vmem:[#allocation5 + $0x4] sm:$0xf]
    %v71 = vld [vmem:[#allocation5 + $0x8] sm:$0xf]
    %v72 = vld [vmem:[#allocation5 + $0xc] sm:$0xf]
    %v73 = vld [vmem:[%s5] sm:$0xf]
    %v74 = vld [vmem:[%s5 + $0x4] sm:$0xf]
    %v75 = vld [vmem:[%s5 + $0x8] sm:$0xf]
    %v76 = vld [vmem:[%s5 + $0xc] sm:$0xf]
    %v77 = vld [vmem:[%s2] sm:$0x1]
    %v79 = vperm.slane %v77, 0
    %v81 = vld [vmem:[%s4] sm:$0x1]
    %v83 = vperm.slane %v81, 0
    %v85 = vld [vmem:[%s6] sm:$0x1]
    %v86 = vld [vmem:[%s0] sm:$0x1]
    %v87 = vld [vmem:[%s0 + $0x8] sm:$0x1]
    %v90 = vrot.slane %v87, 7
    %vm91 = vcmask 1041409
    %v92 = vsel %vm91, %v90, %v86
    %vm94 = vcmask 31744
    %v95 = vsel %vm94, %v92, 0.0
    %vm96 = vcmask 293888
    %v97 = vsel %vm96, %v95, 0.0
    %v98 = vpack.c.bf16 %v97, %v97
    %v108 = vunpack.c.l.b16 %v60
    %v109 = vunpack.c.h.b16 %v60
    %v110 = vunpack.c.l.b16 %v61
    %v111 = vunpack.c.h.b16 %v61
    %v112 = vunpack.c.l.b16 %v62
    %v113 = vunpack.c.h.b16 %v62
    %v114 = vunpack.c.l.b16 %v63
    %v115 = vunpack.c.h.b16 %v63
    %v116 = vunpack.c.l.b16 %v64
    %v117 = vunpack.c.h.b16 %v64
    %v118 = vunpack.c.l.b16 %v65
    %v119 = vunpack.c.h.b16 %v65
    %v120 = vunpack.c.l.b16 %v66
    %v121 = vunpack.c.h.b16 %v66
    %v122 = vunpack.c.l.b16 %v67
    %v123 = vunpack.c.h.b16 %v67
    %v124 = vunpack.c.l.b16 %v68
    %v125 = vunpack.c.h.b16 %v68
    %v126 = vpack.c.b16 %v110, %v108
    %v127 = vpack.c.b16 %v111, %v109
    %v128 = vpack.c.b16 %v114, %v112
    %v129 = vpack.c.b16 %v115, %v113
    %v130 = vpack.c.b16 %v118, %v116
    %v131 = vpack.c.b16 %v119, %v117
    %v132 = vpack.c.b16 %v122, %v120
    %v133 = vpack.c.b16 %v123, %v121
    %v134 = vpack.c.b16 %v124, %v124
    %v135 = vpack.c.b16 %v125, %v125
    %vm144 = vcmask 556032
    %v146 = vsel %vm144, %v98, 0
    %vm148 = vcmask 1041408
    %v150 = vsel %vm148, %v134, 0
    %v153 = vsel %vm148, %v135, 0
    %155 = vmatpush.bf16.msra.mxu0 0
    %156 = vmatpush.bf16.msra.mxu0 0
    %157 = vmatpush.bf16.msra.mxu0 0
    %158 = vmatpush.bf16.msra.mxu0 %v150
    %159 = vmatpush.bf16.msra.mxu0 %v132
    %160 = vmatpush.bf16.msra.mxu0 %v130
    %161 = vmatpush.bf16.msra.mxu0 %v128
    %162 = vmatpush.bf16.msra.mxu0 %v126
    %163 = vmatmul.bf16.gmra.mxu0 %v146
    %v164 = vpop.f32.mrf.mxu0
    %v165 = vadd.f32 0.0, %v164
    %v166 = vpop.f32.mrf.mxu0
    %167 = vdwg.mxu0
    %168 = vmatpush.bf16.msra.mxu0 0
    %169 = vmatpush.bf16.msra.mxu0 0
    %170 = vmatpush.bf16.msra.mxu0 0
    %171 = vmatpush.bf16.msra.mxu0 %v153
    %172 = vmatpush.bf16.msra.mxu0 %v133
    %173 = vmatpush.bf16.msra.mxu0 %v131
    %174 = vmatpush.bf16.msra.mxu0 %v129
    %175 = vmatpush.bf16.msra.mxu0 %v127
    %176 = vmatmul.bf16.gmra.mxu0 %v146
    %v177 = vpop.f32.mrf.mxu0
    %v178 = vadd.f32 0.0, %v177
    %v179 = vpop.f32.mrf.mxu0
    %180 = vdwg.mxu0
    %v181 = vadd.f32 %v165, %v79
    %v182 = vxor.u32 %v181, 2147483648
    %v183 = vmul.f32 %v182, 1.442695
    %v184 = vpow.pop %v183
    %v185 = vadd.f32 %v184, 1.0
    %v186 = vrcp.pop %v185
    %v187 = vmul.f32 %v185, %v186
    %v188 = vsub.f32 1.0, %v187
    %v189 = vmul.f32 %v186, %v188
    %v190 = vadd.f32 %v186, %v189
    %vm191 = vweird.f32 %v185
    %vm192 = vweird.f32 %v186
    %vm193 = vmor %vm191, %vm192
    %v194 = vsel %vm193, %v186, %v190
    %v195 = vand.u32 2147483647, %v185
    %vm196 = vcmp.eq.f32.partialorder %v195, 8.507059e+37
    %v197 = vand.u32 %v185, 2147483648
    %v198 = vor.u32 1.1754944e-38, %v197
    %v199 = vsel %vm196, %v198, %v194
    %v200 = vmul.f32 1.0, %v199
    %v201 = vtanh.pop %v181
    %v202 = vmul.f32 %v200, 0.0
    %204 = vrot.lane.b32.xlu0 %v201, 64
    %v205 = vpop.permute.xlu0 %204
    %v207 = vmul.f32 %v200, %v205
    %209 = vrot.lane.b32.xlu0 %v207, 32
    %v210 = vpop.permute.xlu0 %209
    %v212 = vadd.f32 %v202, %v210
    %v213 = vtanh.pop %v212
    %215 = vrot.lane.b32.xlu0 %v213, 64
    %v216 = vpop.permute.xlu0 %215
    %v218 = vmul.f32 %v200, %v216
    %v219 = vpack.c.bf16 %v218, %v218
    %221 = vrot.lane.b32.xlu0 %v219, 32
    %v222 = vpop.permute.xlu0 %221
    %v227 = vunpack.c.l.b16 %v69
    %v228 = vunpack.c.l.b16 %v70
    %v229 = vunpack.c.l.b16 %v71
    %v230 = vunpack.c.l.b16 %v72
    %v231 = vpack.c.b16 %v228, %v227
    %v232 = vpack.c.b16 %v230, %v229
    %vm235 = vcmask 261120
    %v237 = vsel %vm235, %v222, 0
    %239 = vmatpush.bf16.msra.mxu0 0
    %240 = vmatpush.bf16.msra.mxu0 0
    %241 = vmatpush.bf16.msra.mxu0 0
    %242 = vmatpush.bf16.msra.mxu0 0
    %243 = vmatpush.bf16.msra.mxu0 0
    %244 = vmatpush.bf16.msra.mxu0 0
    %245 = vmatpush.bf16.msra.mxu0 %v232
    %246 = vmatpush.bf16.msra.mxu0 %v231
    %247 = vmatmul.bf16.gmra.mxu0 %v237
    %v248 = vpop.f32.mrf.mxu0
    %v249 = vadd.f32 %v178, %v248
    %v250 = vpop.f32.mrf.mxu0
    %251 = vdwg.mxu0
    %v252 = vadd.f32 %v249, %v83
    %v253 = vxor.u32 %v252, 2147483648
    %v254 = vmul.f32 %v253, 1.442695
    %v255 = vpow.pop %v254
    %v256 = vadd.f32 %v255, 1.0
    %v257 = vrcp.pop %v256
    %v258 = vmul.f32 %v256, %v257
    %v259 = vsub.f32 1.0, %v258
    %v260 = vmul.f32 %v257, %v259
    %v261 = vadd.f32 %v257, %v260
    %vm262 = vweird.f32 %v256
    %vm263 = vweird.f32 %v257
    %vm264 = vmor %vm262, %vm263
    %v265 = vsel %vm264, %v257, %v261
    %v266 = vand.u32 2147483647, %v256
    %vm267 = vcmp.eq.f32.partialorder %v266, 8.507059e+37
    %v268 = vand.u32 %v256, 2147483648
    %v269 = vor.u32 1.1754944e-38, %v268
    %v270 = vsel %vm267, %v269, %v265
    %v271 = vmul.f32 1.0, %v270
    %v272 = vtanh.pop %v252
    %v273 = vmul.f32 %v271, 0.0
    %275 = vrot.lane.b32.xlu0 %v272, 64
    %v276 = vpop.permute.xlu0 %275
    %v278 = vmul.f32 %v271, %v276
    %280 = vrot.lane.b32.xlu0 %v278, 32
    %v281 = vpop.permute.xlu0 %280
    %v283 = vadd.f32 %v273, %v281
    %v284 = vtanh.pop %v283
    %286 = vrot.lane.b32.xlu0 %v284, 64
    %v287 = vpop.permute.xlu0 %286
    %v289 = vmul.f32 %v271, %v287
    %v290 = vld [vmem:[%s0 + $0x1] sm:$0x1]
    %v291 = vld [vmem:[%s0 + $0x9] sm:$0x1]
    %v294 = vrot.slane %v291, 7
    %v295 = vsel %vm91, %v294, %v290
    %298 = vrot.lane.b32.xlu0 %v218, 36
    %v299 = vpop.permute.xlu0 %298
    %302 = vrot.lane.b32.xlu0 %v289, 68
    %v303 = vpop.permute.xlu0 %302
    %v305 = vsel %vm94, %v295, %v299
    %v306 = vsel %vm96, %v305, %v303
    %v307 = vpack.c.bf16 %v306, %v306
    %v309 = vsel %vm144, %v307, 0
    %311 = vmatpush.bf16.msra.mxu0 0
    %312 = vmatpush.bf16.msra.mxu0 0
    %313 = vmatpush.bf16.msra.mxu0 0
    %314 = vmatpush.bf16.msra.mxu0 %v150
    %315 = vmatpush.bf16.msra.mxu0 %v132
    %316 = vmatpush.bf16.msra.mxu0 %v130
    %317 = vmatpush.bf16.msra.mxu0 %v128
    %318 = vmatpush.bf16.msra.mxu0 %v126
    %319 = vmatmul.bf16.gmra.mxu0 %v309
    %v320 = vpop.f32.mrf.mxu0
    %v321 = vadd.f32 0.0, %v320
    %v322 = vpop.f32.mrf.mxu0
    %323 = vdwg.mxu0
    %324 = vmatpush.bf16.msra.mxu0 0
    %325 = vmatpush.bf16.msra.mxu0 0
    %326 = vmatpush.bf16.msra.mxu0 0
    %327 = vmatpush.bf16.msra.mxu0 %v153
    %328 = vmatpush.bf16.msra.mxu0 %v133
    %329 = vmatpush.bf16.msra.mxu0 %v131
    %330 = vmatpush.bf16.msra.mxu0 %v129
    %331 = vmatpush.bf16.msra.mxu0 %v127
    %332 = vmatmul.bf16.gmra.mxu0 %v309
    %v333 = vpop.f32.mrf.mxu0
    %v334 = vadd.f32 0.0, %v333
    %v335 = vpop.f32.mrf.mxu0
    %336 = vdwg.mxu0
    %v337 = vadd.f32 %v321, %v79
    %v338 = vxor.u32 %v337, 2147483648
    %v339 = vmul.f32 %v338, 1.442695
    %v340 = vpow.pop %v339
    %v341 = vadd.f32 %v340, 1.0
    %v342 = vrcp.pop %v341
    %v343 = vmul.f32 %v341, %v342
    %v344 = vsub.f32 1.0, %v343
    %v345 = vmul.f32 %v342, %v344
    %v346 = vadd.f32 %v342, %v345
    %vm347 = vweird.f32 %v341
    %vm348 = vweird.f32 %v342
    %vm349 = vmor %vm347, %vm348
    %v350 = vsel %vm349, %v342, %v346
    %v351 = vand.u32 2147483647, %v341
    %vm352 = vcmp.eq.f32.partialorder %v351, 8.507059e+37
    %v353 = vand.u32 %v341, 2147483648
    %v354 = vor.u32 1.1754944e-38, %v353
    %v355 = vsel %vm352, %v354, %v350
    %v356 = vmul.f32 1.0, %v355
    %v357 = vtanh.pop %v337
    %v358 = vmul.f32 %v356, %v212
    %360 = vrot.lane.b32.xlu0 %v357, 64
    %v361 = vpop.permute.xlu0 %360
    %v363 = vmul.f32 %v356, %v361
    %365 = vrot.lane.b32.xlu0 %v363, 32
    %v366 = vpop.permute.xlu0 %365
    %v368 = vadd.f32 %v358, %v366
    %v369 = vtanh.pop %v368
    %371 = vrot.lane.b32.xlu0 %v369, 64
    %v372 = vpop.permute.xlu0 %371
    %v374 = vmul.f32 %v356, %v372
    %v375 = vpack.c.bf16 %v374, %v374
    %377 = vrot.lane.b32.xlu0 %v375, 32
    %v378 = vpop.permute.xlu0 %377
    %v380 = vsel %vm235, %v378, 0
    %382 = vmatpush.bf16.msra.mxu0 0
    %383 = vmatpush.bf16.msra.mxu0 0
    %384 = vmatpush.bf16.msra.mxu0 0
    %385 = vmatpush.bf16.msra.mxu0 0
    %386 = vmatpush.bf16.msra.mxu0 0
    %387 = vmatpush.bf16.msra.mxu0 0
    %388 = vmatpush.bf16.msra.mxu0 %v232
    %389 = vmatpush.bf16.msra.mxu0 %v231
    %390 = vmatmul.bf16.gmra.mxu0 %v380
    %v391 = vpop.f32.mrf.mxu0
    %v392 = vadd.f32 %v334, %v391
    %v393 = vpop.f32.mrf.mxu0
    %394 = vdwg.mxu0
    %v395 = vadd.f32 %v392, %v83
    %v396 = vxor.u32 %v395, 2147483648
    %v397 = vmul.f32 %v396, 1.442695
    %v398 = vpow.pop %v397
    %v399 = vadd.f32 %v398, 1.0
    %v400 = vrcp.pop %v399
    %v401 = vmul.f32 %v399, %v400
    %v402 = vsub.f32 1.0, %v401
    %v403 = vmul.f32 %v400, %v402
    %v404 = vadd.f32 %v400, %v403
    %vm405 = vweird.f32 %v399
    %vm406 = vweird.f32 %v400
    %vm407 = vmor %vm405, %vm406
    %v408 = vsel %vm407, %v400, %v404
    %v409 = vand.u32 2147483647, %v399
    %vm410 = vcmp.eq.f32.partialorder %v409, 8.507059e+37
    %v411 = vand.u32 %v399, 2147483648
    %v412 = vor.u32 1.1754944e-38, %v411
    %v413 = vsel %vm410, %v412, %v408
    %v414 = vmul.f32 1.0, %v413
    %v415 = vtanh.pop %v395
    %v416 = vmul.f32 %v414, %v283
    %418 = vrot.lane.b32.xlu0 %v415, 64
    %v419 = vpop.permute.xlu0 %418
    %v421 = vmul.f32 %v414, %v419
    %423 = vrot.lane.b32.xlu0 %v421, 32
    %v424 = vpop.permute.xlu0 %423
    %v426 = vadd.f32 %v416, %v424
    %v427 = vtanh.pop %v426
    %429 = vrot.lane.b32.xlu0 %v427, 64
    %v430 = vpop.permute.xlu0 %429
    %v432 = vmul.f32 %v414, %v430
    %v433 = vld [vmem:[%s0 + $0x2] sm:$0x1]
    %v434 = vld [vmem:[%s0 + $0xa] sm:$0x1]
    %v437 = vrot.slane %v434, 7
    %v438 = vsel %vm91, %v437, %v433
    %441 = vrot.lane.b32.xlu0 %v374, 36
    %v442 = vpop.permute.xlu0 %441
    %445 = vrot.lane.b32.xlu0 %v432, 68
    %v446 = vpop.permute.xlu0 %445
    %v448 = vsel %vm94, %v438, %v442
    %v449 = vsel %vm96, %v448, %v446
    %v450 = vpack.c.bf16 %v449, %v449
    %v452 = vsel %vm144, %v450, 0
    %454 = vmatpush.bf16.msra.mxu0 0
    %455 = vmatpush.bf16.msra.mxu0 0
    %456 = vmatpush.bf16.msra.mxu0 0
    %457 = vmatpush.bf16.msra.mxu0 %v150
    %458 = vmatpush.bf16.msra.mxu0 %v132
    %459 = vmatpush.bf16.msra.mxu0 %v130
    %460 = vmatpush.bf16.msra.mxu0 %v128
    %461 = vmatpush.bf16.msra.mxu0 %v126
    %462 = vmatmul.bf16.gmra.mxu0 %v452
    %v463 = vpop.f32.mrf.mxu0
    %v464 = vadd.f32 0.0, %v463
    %v465 = vpop.f32.mrf.mxu0
    %466 = vdwg.mxu0
    %467 = vmatpush.bf16.msra.mxu0 0
    %468 = vmatpush.bf16.msra.mxu0 0
    %469 = vmatpush.bf16.msra.mxu0 0
    %470 = vmatpush.bf16.msra.mxu0 %v153
    %471 = vmatpush.bf16.msra.mxu0 %v133
    %472 = vmatpush.bf16.msra.mxu0 %v131
    %473 = vmatpush.bf16.msra.mxu0 %v129
    %474 = vmatpush.bf16.msra.mxu0 %v127
    %475 = vmatmul.bf16.gmra.mxu0 %v452
    %v476 = vpop.f32.mrf.mxu0
    %v477 = vadd.f32 0.0, %v476
    %v478 = vpop.f32.mrf.mxu0
    %479 = vdwg.mxu0
    %v480 = vadd.f32 %v464, %v79
    %v481 = vxor.u32 %v480, 2147483648
    %v482 = vmul.f32 %v481, 1.442695
    %v483 = vpow.pop %v482
    %v484 = vadd.f32 %v483, 1.0
    %v485 = vrcp.pop %v484
    %v486 = vmul.f32 %v484, %v485
    %v487 = vsub.f32 1.0, %v486
    %v488 = vmul.f32 %v485, %v487
    %v489 = vadd.f32 %v485, %v488
    %vm490 = vweird.f32 %v484
    %vm491 = vweird.f32 %v485
    %vm492 = vmor %vm490, %vm491
    %v493 = vsel %vm492, %v485, %v489
    %v494 = vand.u32 2147483647, %v484
    %vm495 = vcmp.eq.f32.partialorder %v494, 8.507059e+37
    %v496 = vand.u32 %v484, 2147483648
    %v497 = vor.u32 1.1754944e-38, %v496
    %v498 = vsel %vm495, %v497, %v493
    %v499 = vmul.f32 1.0, %v498
    %v500 = vtanh.pop %v480
    %v501 = vmul.f32 %v499, %v368
    %503 = vrot.lane.b32.xlu0 %v500, 64
    %v504 = vpop.permute.xlu0 %503
    %v506 = vmul.f32 %v499, %v504
    %508 = vrot.lane.b32.xlu0 %v506, 32
    %v509 = vpop.permute.xlu0 %508
    %v511 = vadd.f32 %v501, %v509
    %v512 = vtanh.pop %v511
    %514 = vrot.lane.b32.xlu0 %v512, 64
    %v515 = vpop.permute.xlu0 %514
    %v517 = vmul.f32 %v499, %v515
    %v518 = vpack.c.bf16 %v517, %v517
    %520 = vrot.lane.b32.xlu0 %v518, 32
    %v521 = vpop.permute.xlu0 %520
    %v523 = vsel %vm235, %v521, 0
    %525 = vmatpush.bf16.msra.mxu0 0
    %526 = vmatpush.bf16.msra.mxu0 0
    %527 = vmatpush.bf16.msra.mxu0 0
    %528 = vmatpush.bf16.msra.mxu0 0
    %529 = vmatpush.bf16.msra.mxu0 0
    %530 = vmatpush.bf16.msra.mxu0 0
    %531 = vmatpush.bf16.msra.mxu0 %v232
    %532 = vmatpush.bf16.msra.mxu0 %v231
    %533 = vmatmul.bf16.gmra.mxu0 %v523
    %v534 = vpop.f32.mrf.mxu0
    %v535 = vadd.f32 %v477, %v534
    %v536 = vpop.f32.mrf.mxu0
    %537 = vdwg.mxu0
    %v538 = vadd.f32 %v535, %v83
    %v539 = vxor.u32 %v538, 2147483648
    %v540 = vmul.f32 %v539, 1.442695
    %v541 = vpow.pop %v540
    %v542 = vadd.f32 %v541, 1.0
    %v543 = vrcp.pop %v542
    %v544 = vmul.f32 %v542, %v543
    %v545 = vsub.f32 1.0, %v544
    %v546 = vmul.f32 %v543, %v545
    %v547 = vadd.f32 %v543, %v546
    %vm548 = vweird.f32 %v542
    %vm549 = vweird.f32 %v543
    %vm550 = vmor %vm548, %vm549
    %v551 = vsel %vm550, %v543, %v547
    %v552 = vand.u32 2147483647, %v542
    %vm553 = vcmp.eq.f32.partialorder %v552, 8.507059e+37
    %v554 = vand.u32 %v542, 2147483648
    %v555 = vor.u32 1.1754944e-38, %v554
    %v556 = vsel %vm553, %v555, %v551
    %v557 = vmul.f32 1.0, %v556
    %v558 = vtanh.pop %v538
    %v559 = vmul.f32 %v557, %v426
    %561 = vrot.lane.b32.xlu0 %v558, 64
    %v562 = vpop.permute.xlu0 %561
    %v564 = vmul.f32 %v557, %v562
    %566 = vrot.lane.b32.xlu0 %v564, 32
    %v567 = vpop.permute.xlu0 %566
    %v569 = vadd.f32 %v559, %v567
    %v570 = vtanh.pop %v569
    %572 = vrot.lane.b32.xlu0 %v570, 64
    %v573 = vpop.permute.xlu0 %572
    %v575 = vmul.f32 %v557, %v573
    %v576 = vld [vmem:[%s0 + $0x3] sm:$0x1]
    %v577 = vld [vmem:[%s0 + $0xb] sm:$0x1]
    %v580 = vrot.slane %v577, 7
    %v581 = vsel %vm91, %v580, %v576
    %584 = vrot.lane.b32.xlu0 %v517, 36
    %v585 = vpop.permute.xlu0 %584
    %588 = vrot.lane.b32.xlu0 %v575, 68
    %v589 = vpop.permute.xlu0 %588
    %v591 = vsel %vm94, %v581, %v585
    %v592 = vsel %vm96, %v591, %v589
    %v593 = vpack.c.bf16 %v592, %v592
    %v595 = vsel %vm144, %v593, 0
    %597 = vmatpush.bf16.msra.mxu0 0
    %598 = vmatpush.bf16.msra.mxu0 0
    %599 = vmatpush.bf16.msra.mxu0 0
    %600 = vmatpush.bf16.msra.mxu0 %v150
    %601 = vmatpush.bf16.msra.mxu0 %v132
    %602 = vmatpush.bf16.msra.mxu0 %v130
    %603 = vmatpush.bf16.msra.mxu0 %v128
    %604 = vmatpush.bf16.msra.mxu0 %v126
    %605 = vmatmul.bf16.gmra.mxu0 %v595
    %v606 = vpop.f32.mrf.mxu0
    %v607 = vadd.f32 0.0, %v606
    %v608 = vpop.f32.mrf.mxu0
    %609 = vdwg.mxu0
    %610 = vmatpush.bf16.msra.mxu0 0
    %611 = vmatpush.bf16.msra.mxu0 0
    %612 = vmatpush.bf16.msra.mxu0 0
    %613 = vmatpush.bf16.msra.mxu0 %v153
    %614 = vmatpush.bf16.msra.mxu0 %v133
    %615 = vmatpush.bf16.msra.mxu0 %v131
    %616 = vmatpush.bf16.msra.mxu0 %v129
    %617 = vmatpush.bf16.msra.mxu0 %v127
    %618 = vmatmul.bf16.gmra.mxu0 %v595
    %v619 = vpop.f32.mrf.mxu0
    %v620 = vadd.f32 0.0, %v619
    %v621 = vpop.f32.mrf.mxu0
    %622 = vdwg.mxu0
    %v623 = vadd.f32 %v607, %v79
    %v624 = vxor.u32 %v623, 2147483648
    %v625 = vmul.f32 %v624, 1.442695
    %v626 = vpow.pop %v625
    %v627 = vadd.f32 %v626, 1.0
    %v628 = vrcp.pop %v627
    %v629 = vmul.f32 %v627, %v628
    %v630 = vsub.f32 1.0, %v629
    %v631 = vmul.f32 %v628, %v630
    %v632 = vadd.f32 %v628, %v631
    %vm633 = vweird.f32 %v627
    %vm634 = vweird.f32 %v628
    %vm635 = vmor %vm633, %vm634
    %v636 = vsel %vm635, %v628, %v632
    %v637 = vand.u32 2147483647, %v627
    %vm638 = vcmp.eq.f32.partialorder %v637, 8.507059e+37
    %v639 = vand.u32 %v627, 2147483648
    %v640 = vor.u32 1.1754944e-38, %v639
    %v641 = vsel %vm638, %v640, %v636
    %v642 = vmul.f32 1.0, %v641
    %v643 = vtanh.pop %v623
    %v644 = vmul.f32 %v642, %v511
    %646 = vrot.lane.b32.xlu0 %v643, 64
    %v647 = vpop.permute.xlu0 %646
    %v649 = vmul.f32 %v642, %v647
    %651 = vrot.lane.b32.xlu0 %v649, 32
    %v652 = vpop.permute.xlu0 %651
    %v654 = vadd.f32 %v644, %v652
    %v655 = vtanh.pop %v654
    %657 = vrot.lane.b32.xlu0 %v655, 64
    %v658 = vpop.permute.xlu0 %657
    %v660 = vmul.f32 %v642, %v658
    %v661 = vpack.c.bf16 %v660, %v660
    %663 = vrot.lane.b32.xlu0 %v661, 32
    %v664 = vpop.permute.xlu0 %663
    %v666 = vsel %vm235, %v664, 0
    %668 = vmatpush.bf16.msra.mxu0 0
    %669 = vmatpush.bf16.msra.mxu0 0
    %670 = vmatpush.bf16.msra.mxu0 0
    %671 = vmatpush.bf16.msra.mxu0 0
    %672 = vmatpush.bf16.msra.mxu0 0
    %673 = vmatpush.bf16.msra.mxu0 0
    %674 = vmatpush.bf16.msra.mxu0 %v232
    %675 = vmatpush.bf16.msra.mxu0 %v231
    %676 = vmatmul.bf16.gmra.mxu0 %v666
    %v677 = vpop.f32.mrf.mxu0
    %v678 = vadd.f32 %v620, %v677
    %v679 = vpop.f32.mrf.mxu0
    %680 = vdwg.mxu0
    %v681 = vadd.f32 %v678, %v83
    %v682 = vxor.u32 %v681, 2147483648
    %v683 = vmul.f32 %v682, 1.442695
    %v684 = vpow.pop %v683
    %v685 = vadd.f32 %v684, 1.0
    %v686 = vrcp.pop %v685
    %v687 = vmul.f32 %v685, %v686
    %v688 = vsub.f32 1.0, %v687
    %v689 = vmul.f32 %v686, %v688
    %v690 = vadd.f32 %v686, %v689
    %vm691 = vweird.f32 %v685
    %vm692 = vweird.f32 %v686
    %vm693 = vmor %vm691, %vm692
    %v694 = vsel %vm693, %v686, %v690
    %v695 = vand.u32 2147483647, %v685
    %vm696 = vcmp.eq.f32.partialorder %v695, 8.507059e+37
    %v697 = vand.u32 %v685, 2147483648
    %v698 = vor.u32 1.1754944e-38, %v697
    %v699 = vsel %vm696, %v698, %v694
    %v700 = vmul.f32 1.0, %v699
    %v701 = vtanh.pop %v681
    %v702 = vmul.f32 %v700, %v569
    %704 = vrot.lane.b32.xlu0 %v701, 64
    %v705 = vpop.permute.xlu0 %704
    %v707 = vmul.f32 %v700, %v705
    %709 = vrot.lane.b32.xlu0 %v707, 32
    %v710 = vpop.permute.xlu0 %709
    %v712 = vadd.f32 %v702, %v710
    %v713 = vtanh.pop %v712
    %715 = vrot.lane.b32.xlu0 %v713, 64
    %v716 = vpop.permute.xlu0 %715
    %v718 = vmul.f32 %v700, %v716
    %v719 = vld [vmem:[%s0 + $0x4] sm:$0x1]
    %v720 = vld [vmem:[%s0 + $0xc] sm:$0x1]
    %v723 = vrot.slane %v720, 7
    %v724 = vsel %vm91, %v723, %v719
    %727 = vrot.lane.b32.xlu0 %v660, 36
    %v728 = vpop.permute.xlu0 %727
    %731 = vrot.lane.b32.xlu0 %v718, 68
    %v732 = vpop.permute.xlu0 %731
    %v734 = vsel %vm94, %v724, %v728
    %v735 = vsel %vm96, %v734, %v732
    %v736 = vpack.c.bf16 %v735, %v735
    %v738 = vsel %vm144, %v736, 0
    %740 = vmatpush.bf16.msra.mxu0 0
    %741 = vmatpush.bf16.msra.mxu0 0
    %742 = vmatpush.bf16.msra.mxu0 0
    %743 = vmatpush.bf16.msra.mxu0 %v150
    %744 = vmatpush.bf16.msra.mxu0 %v132
    %745 = vmatpush.bf16.msra.mxu0 %v130
    %746 = vmatpush.bf16.msra.mxu0 %v128
    %747 = vmatpush.bf16.msra.mxu0 %v126
    %748 = vmatmul.bf16.gmra.mxu0 %v738
    %v749 = vpop.f32.mrf.mxu0
    %v750 = vadd.f32 0.0, %v749
    %v751 = vpop.f32.mrf.mxu0
    %752 = vdwg.mxu0
    %753 = vmatpush.bf16.msra.mxu0 0
    %754 = vmatpush.bf16.msra.mxu0 0
    %755 = vmatpush.bf16.msra.mxu0 0
    %756 = vmatpush.bf16.msra.mxu0 %v153
    %757 = vmatpush.bf16.msra.mxu0 %v133
    %758 = vmatpush.bf16.msra.mxu0 %v131
    %759 = vmatpush.bf16.msra.mxu0 %v129
    %760 = vmatpush.bf16.msra.mxu0 %v127
    %761 = vmatmul.bf16.gmra.mxu0 %v738
    %v762 = vpop.f32.mrf.mxu0
    %v763 = vadd.f32 0.0, %v762
    %v764 = vpop.f32.mrf.mxu0
    %765 = vdwg.mxu0
    %v766 = vadd.f32 %v750, %v79
    %v767 = vxor.u32 %v766, 2147483648
    %v768 = vmul.f32 %v767, 1.442695
    %v769 = vpow.pop %v768
    %v770 = vadd.f32 %v769, 1.0
    %v771 = vrcp.pop %v770
    %v772 = vmul.f32 %v770, %v771
    %v773 = vsub.f32 1.0, %v772
    %v774 = vmul.f32 %v771, %v773
    %v775 = vadd.f32 %v771, %v774
    %vm776 = vweird.f32 %v770
    %vm777 = vweird.f32 %v771
    %vm778 = vmor %vm776, %vm777
    %v779 = vsel %vm778, %v771, %v775
    %v780 = vand.u32 2147483647, %v770
    %vm781 = vcmp.eq.f32.partialorder %v780, 8.507059e+37
    %v782 = vand.u32 %v770, 2147483648
    %v783 = vor.u32 1.1754944e-38, %v782
    %v784 = vsel %vm781, %v783, %v779
    %v785 = vmul.f32 1.0, %v784
    %v786 = vtanh.pop %v766
    %v787 = vmul.f32 %v785, %v654
    %789 = vrot.lane.b32.xlu0 %v786, 64
    %v790 = vpop.permute.xlu0 %789
    %v792 = vmul.f32 %v785, %v790
    %794 = vrot.lane.b32.xlu0 %v792, 32
    %v795 = vpop.permute.xlu0 %794
    %v797 = vadd.f32 %v787, %v795
    %v798 = vtanh.pop %v797
    %800 = vrot.lane.b32.xlu0 %v798, 64
    %v801 = vpop.permute.xlu0 %800
    %v803 = vmul.f32 %v785, %v801
    %v804 = vpack.c.bf16 %v803, %v803
    %806 = vrot.lane.b32.xlu0 %v804, 32
    %v807 = vpop.permute.xlu0 %806
    %v809 = vsel %vm235, %v807, 0
    %811 = vmatpush.bf16.msra.mxu0 0
    %812 = vmatpush.bf16.msra.mxu0 0
    %813 = vmatpush.bf16.msra.mxu0 0
    %814 = vmatpush.bf16.msra.mxu0 0
    %815 = vmatpush.bf16.msra.mxu0 0
    %816 = vmatpush.bf16.msra.mxu0 0
    %817 = vmatpush.bf16.msra.mxu0 %v232
    %818 = vmatpush.bf16.msra.mxu0 %v231
    %819 = vmatmul.bf16.gmra.mxu0 %v809
    %v820 = vpop.f32.mrf.mxu0
    %v821 = vadd.f32 %v763, %v820
    %v822 = vpop.f32.mrf.mxu0
    %823 = vdwg.mxu0
    %v824 = vadd.f32 %v821, %v83
    %v825 = vxor.u32 %v824, 2147483648
    %v826 = vmul.f32 %v825, 1.442695
    %v827 = vpow.pop %v826
    %v828 = vadd.f32 %v827, 1.0
    %v829 = vrcp.pop %v828
    %v830 = vmul.f32 %v828, %v829
    %v831 = vsub.f32 1.0, %v830
    %v832 = vmul.f32 %v829, %v831
    %v833 = vadd.f32 %v829, %v832
    %vm834 = vweird.f32 %v828
    %vm835 = vweird.f32 %v829
    %vm836 = vmor %vm834, %vm835
    %v837 = vsel %vm836, %v829, %v833
    %v838 = vand.u32 2147483647, %v828
    %vm839 = vcmp.eq.f32.partialorder %v838, 8.507059e+37
    %v840 = vand.u32 %v828, 2147483648
    %v841 = vor.u32 1.1754944e-38, %v840
    %v842 = vsel %vm839, %v841, %v837
    %v843 = vmul.f32 1.0, %v842
    %v844 = vtanh.pop %v824
    %v845 = vmul.f32 %v843, %v712
    %847 = vrot.lane.b32.xlu0 %v844, 64
    %v848 = vpop.permute.xlu0 %847
    %v850 = vmul.f32 %v843, %v848
    %852 = vrot.lane.b32.xlu0 %v850, 32
    %v853 = vpop.permute.xlu0 %852
    %v855 = vadd.f32 %v845, %v853
    %v856 = vtanh.pop %v855
    %858 = vrot.lane.b32.xlu0 %v856, 64
    %v859 = vpop.permute.xlu0 %858
    %v861 = vmul.f32 %v843, %v859
    %v862 = vld [vmem:[%s0 + $0x5] sm:$0x1]
    %v863 = vld [vmem:[%s0 + $0xd] sm:$0x1]
    %v866 = vrot.slane %v863, 7
    %v867 = vsel %vm91, %v866, %v862
    %870 = vrot.lane.b32.xlu0 %v803, 36
    %v871 = vpop.permute.xlu0 %870
    %874 = vrot.lane.b32.xlu0 %v861, 68
    %v875 = vpop.permute.xlu0 %874
    %v877 = vsel %vm94, %v867, %v871
    %v878 = vsel %vm96, %v877, %v875
    %v879 = vpack.c.bf16 %v878, %v878
    %v881 = vsel %vm144, %v879, 0
    %883 = vmatpush.bf16.msra.mxu0 0
    %884 = vmatpush.bf16.msra.mxu0 0
    %885 = vmatpush.bf16.msra.mxu0 0
    %886 = vmatpush.bf16.msra.mxu0 %v150
    %887 = vmatpush.bf16.msra.mxu0 %v132
    %888 = vmatpush.bf16.msra.mxu0 %v130
    %889 = vmatpush.bf16.msra.mxu0 %v128
    %890 = vmatpush.bf16.msra.mxu0 %v126
    %891 = vmatmul.bf16.gmra.mxu0 %v881
    %v892 = vpop.f32.mrf.mxu0
    %v893 = vadd.f32 0.0, %v892
    %v894 = vpop.f32.mrf.mxu0
    %895 = vdwg.mxu0
    %896 = vmatpush.bf16.msra.mxu0 0
    %897 = vmatpush.bf16.msra.mxu0 0
    %898 = vmatpush.bf16.msra.mxu0 0
    %899 = vmatpush.bf16.msra.mxu0 %v153
    %900 = vmatpush.bf16.msra.mxu0 %v133
    %901 = vmatpush.bf16.msra.mxu0 %v131
    %902 = vmatpush.bf16.msra.mxu0 %v129
    %903 = vmatpush.bf16.msra.mxu0 %v127
    %904 = vmatmul.bf16.gmra.mxu0 %v881
    %v905 = vpop.f32.mrf.mxu0
    %v906 = vadd.f32 0.0, %v905
    %v907 = vpop.f32.mrf.mxu0
    %908 = vdwg.mxu0
    %v909 = vadd.f32 %v893, %v79
    %v910 = vxor.u32 %v909, 2147483648
    %v911 = vmul.f32 %v910, 1.442695
    %v912 = vpow.pop %v911
    %v913 = vadd.f32 %v912, 1.0
    %v914 = vrcp.pop %v913
    %v915 = vmul.f32 %v913, %v914
    %v916 = vsub.f32 1.0, %v915
    %v917 = vmul.f32 %v914, %v916
    %v918 = vadd.f32 %v914, %v917
    %vm919 = vweird.f32 %v913
    %vm920 = vweird.f32 %v914
    %vm921 = vmor %vm919, %vm920
    %v922 = vsel %vm921, %v914, %v918
    %v923 = vand.u32 2147483647, %v913
    %vm924 = vcmp.eq.f32.partialorder %v923, 8.507059e+37
    %v925 = vand.u32 %v913, 2147483648
    %v926 = vor.u32 1.1754944e-38, %v925
    %v927 = vsel %vm924, %v926, %v922
    %v928 = vmul.f32 1.0, %v927
    %v929 = vtanh.pop %v909
    %v930 = vmul.f32 %v928, %v797
    %932 = vrot.lane.b32.xlu0 %v929, 64
    %v933 = vpop.permute.xlu0 %932
    %v935 = vmul.f32 %v928, %v933
    %937 = vrot.lane.b32.xlu0 %v935, 32
    %v938 = vpop.permute.xlu0 %937
    %v940 = vadd.f32 %v930, %v938
    %v941 = vtanh.pop %v940
    %943 = vrot.lane.b32.xlu0 %v941, 64
    %v944 = vpop.permute.xlu0 %943
    %v946 = vmul.f32 %v928, %v944
    %v947 = vpack.c.bf16 %v946, %v946
    %949 = vrot.lane.b32.xlu0 %v947, 32
    %v950 = vpop.permute.xlu0 %949
    %v952 = vsel %vm235, %v950, 0
    %954 = vmatpush.bf16.msra.mxu0 0
    %955 = vmatpush.bf16.msra.mxu0 0
    %956 = vmatpush.bf16.msra.mxu0 0
    %957 = vmatpush.bf16.msra.mxu0 0
    %958 = vmatpush.bf16.msra.mxu0 0
    %959 = vmatpush.bf16.msra.mxu0 0
    %960 = vmatpush.bf16.msra.mxu0 %v232
    %961 = vmatpush.bf16.msra.mxu0 %v231
    %962 = vmatmul.bf16.gmra.mxu0 %v952
    %v963 = vpop.f32.mrf.mxu0
    %v964 = vadd.f32 %v906, %v963
    %v965 = vpop.f32.mrf.mxu0
    %966 = vdwg.mxu0
    %v967 = vadd.f32 %v964, %v83
    %v968 = vxor.u32 %v967, 2147483648
    %v969 = vmul.f32 %v968, 1.442695
    %v970 = vpow.pop %v969
    %v971 = vadd.f32 %v970, 1.0
    %v972 = vrcp.pop %v971
    %v973 = vmul.f32 %v971, %v972
    %v974 = vsub.f32 1.0, %v973
    %v975 = vmul.f32 %v972, %v974
    %v976 = vadd.f32 %v972, %v975
    %vm977 = vweird.f32 %v971
    %vm978 = vweird.f32 %v972
    %vm979 = vmor %vm977, %vm978
    %v980 = vsel %vm979, %v972, %v976
    %v981 = vand.u32 2147483647, %v971
    %vm982 = vcmp.eq.f32.partialorder %v981, 8.507059e+37
    %v983 = vand.u32 %v971, 2147483648
    %v984 = vor.u32 1.1754944e-38, %v983
    %v985 = vsel %vm982, %v984, %v980
    %v986 = vmul.f32 1.0, %v985
    %v987 = vtanh.pop %v967
    %v988 = vmul.f32 %v986, %v855
    %990 = vrot.lane.b32.xlu0 %v987, 64
    %v991 = vpop.permute.xlu0 %990
    %v993 = vmul.f32 %v986, %v991
    %995 = vrot.lane.b32.xlu0 %v993, 32
    %v996 = vpop.permute.xlu0 %995
    %v998 = vadd.f32 %v988, %v996
    %v999 = vtanh.pop %v998
    %1001 = vrot.lane.b32.xlu0 %v999, 64
    %v1002 = vpop.permute.xlu0 %1001
    %v1004 = vmul.f32 %v986, %v1002
    %v1005 = vld [vmem:[%s0 + $0x6] sm:$0x1]
    %v1006 = vld [vmem:[%s0 + $0xe] sm:$0x1]
    %v1009 = vrot.slane %v1006, 7
    %v1010 = vsel %vm91, %v1009, %v1005
    %1013 = vrot.lane.b32.xlu0 %v946, 36
    %v1014 = vpop.permute.xlu0 %1013
    %1017 = vrot.lane.b32.xlu0 %v1004, 68
    %v1018 = vpop.permute.xlu0 %1017
    %v1020 = vsel %vm94, %v1010, %v1014
    %v1021 = vsel %vm96, %v1020, %v1018
    %v1022 = vpack.c.bf16 %v1021, %v1021
    %v1024 = vsel %vm144, %v1022, 0
    %1026 = vmatpush.bf16.msra.mxu0 0
    %1027 = vmatpush.bf16.msra.mxu0 0
    %1028 = vmatpush.bf16.msra.mxu0 0
    %1029 = vmatpush.bf16.msra.mxu0 %v150
    %1030 = vmatpush.bf16.msra.mxu0 %v132
    %1031 = vmatpush.bf16.msra.mxu0 %v130
    %1032 = vmatpush.bf16.msra.mxu0 %v128
    %1033 = vmatpush.bf16.msra.mxu0 %v126
    %1034 = vmatmul.bf16.gmra.mxu0 %v1024
    %v1035 = vpop.f32.mrf.mxu0
    %v1036 = vadd.f32 0.0, %v1035
    %v1037 = vpop.f32.mrf.mxu0
    %1038 = vdwg.mxu0
    %1039 = vmatpush.bf16.msra.mxu0 0
    %1040 = vmatpush.bf16.msra.mxu0 0
    %1041 = vmatpush.bf16.msra.mxu0 0
    %1042 = vmatpush.bf16.msra.mxu0 %v153
    %1043 = vmatpush.bf16.msra.mxu0 %v133
    %1044 = vmatpush.bf16.msra.mxu0 %v131
    %1045 = vmatpush.bf16.msra.mxu0 %v129
    %1046 = vmatpush.bf16.msra.mxu0 %v127
    %1047 = vmatmul.bf16.gmra.mxu0 %v1024
    %v1048 = vpop.f32.mrf.mxu0
    %v1049 = vadd.f32 0.0, %v1048
    %v1050 = vpop.f32.mrf.mxu0
    %1051 = vdwg.mxu0
    %v1052 = vadd.f32 %v1036, %v79
    %v1053 = vxor.u32 %v1052, 2147483648
    %v1054 = vmul.f32 %v1053, 1.442695
    %v1055 = vpow.pop %v1054
    %v1056 = vadd.f32 %v1055, 1.0
    %v1057 = vrcp.pop %v1056
    %v1058 = vmul.f32 %v1056, %v1057
    %v1059 = vsub.f32 1.0, %v1058
    %v1060 = vmul.f32 %v1057, %v1059
    %v1061 = vadd.f32 %v1057, %v1060
    %vm1062 = vweird.f32 %v1056
    %vm1063 = vweird.f32 %v1057
    %vm1064 = vmor %vm1062, %vm1063
    %v1065 = vsel %vm1064, %v1057, %v1061
    %v1066 = vand.u32 2147483647, %v1056
    %vm1067 = vcmp.eq.f32.partialorder %v1066, 8.507059e+37
    %v1068 = vand.u32 %v1056, 2147483648
    %v1069 = vor.u32 1.1754944e-38, %v1068
    %v1070 = vsel %vm1067, %v1069, %v1065
    %v1071 = vmul.f32 1.0, %v1070
    %v1072 = vtanh.pop %v1052
    %v1073 = vmul.f32 %v1071, %v940
    %1075 = vrot.lane.b32.xlu0 %v1072, 64
    %v1076 = vpop.permute.xlu0 %1075
    %v1078 = vmul.f32 %v1071, %v1076
    %1080 = vrot.lane.b32.xlu0 %v1078, 32
    %v1081 = vpop.permute.xlu0 %1080
    %v1083 = vadd.f32 %v1073, %v1081
    %v1084 = vtanh.pop %v1083
    %1086 = vrot.lane.b32.xlu0 %v1084, 64
    %v1087 = vpop.permute.xlu0 %1086
    %v1089 = vmul.f32 %v1071, %v1087
    %v1090 = vpack.c.bf16 %v1089, %v1089
    %1092 = vrot.lane.b32.xlu0 %v1090, 32
    %v1093 = vpop.permute.xlu0 %1092
    %v1095 = vsel %vm235, %v1093, 0
    %1097 = vmatpush.bf16.msra.mxu0 0
    %1098 = vmatpush.bf16.msra.mxu0 0
    %1099 = vmatpush.bf16.msra.mxu0 0
    %1100 = vmatpush.bf16.msra.mxu0 0
    %1101 = vmatpush.bf16.msra.mxu0 0
    %1102 = vmatpush.bf16.msra.mxu0 0
    %1103 = vmatpush.bf16.msra.mxu0 %v232
    %1104 = vmatpush.bf16.msra.mxu0 %v231
    %1105 = vmatmul.bf16.gmra.mxu0 %v1095
    %v1106 = vpop.f32.mrf.mxu0
    %v1107 = vadd.f32 %v1049, %v1106
    %v1108 = vpop.f32.mrf.mxu0
    %1109 = vdwg.mxu0
    %v1110 = vadd.f32 %v1107, %v83
    %v1111 = vxor.u32 %v1110, 2147483648
    %v1112 = vmul.f32 %v1111, 1.442695
    %v1113 = vpow.pop %v1112
    %v1114 = vadd.f32 %v1113, 1.0
    %v1115 = vrcp.pop %v1114
    %v1116 = vmul.f32 %v1114, %v1115
    %v1117 = vsub.f32 1.0, %v1116
    %v1118 = vmul.f32 %v1115, %v1117
    %v1119 = vadd.f32 %v1115, %v1118
    %vm1120 = vweird.f32 %v1114
    %vm1121 = vweird.f32 %v1115
    %vm1122 = vmor %vm1120, %vm1121
    %v1123 = vsel %vm1122, %v1115, %v1119
    %v1124 = vand.u32 2147483647, %v1114
    %vm1125 = vcmp.eq.f32.partialorder %v1124, 8.507059e+37
    %v1126 = vand.u32 %v1114, 2147483648
    %v1127 = vor.u32 1.1754944e-38, %v1126
    %v1128 = vsel %vm1125, %v1127, %v1123
    %v1129 = vmul.f32 1.0, %v1128
    %v1130 = vtanh.pop %v1110
    %v1131 = vmul.f32 %v1129, %v998
    %1133 = vrot.lane.b32.xlu0 %v1130, 64
    %v1134 = vpop.permute.xlu0 %1133
    %v1136 = vmul.f32 %v1129, %v1134
    %1138 = vrot.lane.b32.xlu0 %v1136, 32
    %v1139 = vpop.permute.xlu0 %1138
    %v1141 = vadd.f32 %v1131, %v1139
    %v1142 = vtanh.pop %v1141
    %1144 = vrot.lane.b32.xlu0 %v1142, 64
    %v1145 = vpop.permute.xlu0 %1144
    %v1147 = vmul.f32 %v1129, %v1145
    %v1148 = vld [vmem:[%s0 + $0x7] sm:$0x1]
    %v1149 = vld [vmem:[%s0 + $0xf] sm:$0x1]
    %v1152 = vrot.slane %v1149, 7
    %v1153 = vsel %vm91, %v1152, %v1148
    %1156 = vrot.lane.b32.xlu0 %v1089, 36
    %v1157 = vpop.permute.xlu0 %1156
    %1160 = vrot.lane.b32.xlu0 %v1147, 68
    %v1161 = vpop.permute.xlu0 %1160
    %v1163 = vsel %vm94, %v1153, %v1157
    %v1164 = vsel %vm96, %v1163, %v1161
    %v1165 = vpack.c.bf16 %v1164, %v1164
    %v1167 = vsel %vm144, %v1165, 0
    %1169 = vmatpush.bf16.msra.mxu0 0
    %1170 = vmatpush.bf16.msra.mxu0 0
    %1171 = vmatpush.bf16.msra.mxu0 0
    %1172 = vmatpush.bf16.msra.mxu0 %v150
    %1173 = vmatpush.bf16.msra.mxu0 %v132
    %1174 = vmatpush.bf16.msra.mxu0 %v130
    %1175 = vmatpush.bf16.msra.mxu0 %v128
    %1176 = vmatpush.bf16.msra.mxu0 %v126
    %1177 = vmatmul.bf16.gmra.mxu0 %v1167
    %v1178 = vpop.f32.mrf.mxu0
    %v1179 = vadd.f32 0.0, %v1178
    %v1180 = vpop.f32.mrf.mxu0
    %1181 = vdwg.mxu0
    %1182 = vmatpush.bf16.msra.mxu0 0
    %1183 = vmatpush.bf16.msra.mxu0 0
    %1184 = vmatpush.bf16.msra.mxu0 0
    %1185 = vmatpush.bf16.msra.mxu0 %v153
    %1186 = vmatpush.bf16.msra.mxu0 %v133
    %1187 = vmatpush.bf16.msra.mxu0 %v131
    %1188 = vmatpush.bf16.msra.mxu0 %v129
    %1189 = vmatpush.bf16.msra.mxu0 %v127
    %1190 = vmatmul.bf16.gmra.mxu0 %v1167
    %v1191 = vpop.f32.mrf.mxu0
    %v1192 = vadd.f32 0.0, %v1191
    %v1193 = vpop.f32.mrf.mxu0
    %1194 = vdwg.mxu0
    %v1195 = vadd.f32 %v1179, %v79
    %v1196 = vxor.u32 %v1195, 2147483648
    %v1197 = vmul.f32 %v1196, 1.442695
    %v1198 = vpow.pop %v1197
    %v1199 = vadd.f32 %v1198, 1.0
    %v1200 = vrcp.pop %v1199
    %v1201 = vmul.f32 %v1199, %v1200
    %v1202 = vsub.f32 1.0, %v1201
    %v1203 = vmul.f32 %v1200, %v1202
    %v1204 = vadd.f32 %v1200, %v1203
    %vm1205 = vweird.f32 %v1199
    %vm1206 = vweird.f32 %v1200
    %vm1207 = vmor %vm1205, %vm1206
    %v1208 = vsel %vm1207, %v1200, %v1204
    %v1209 = vand.u32 2147483647, %v1199
    %vm1210 = vcmp.eq.f32.partialorder %v1209, 8.507059e+37
    %v1211 = vand.u32 %v1199, 2147483648
    %v1212 = vor.u32 1.1754944e-38, %v1211
    %v1213 = vsel %vm1210, %v1212, %v1208
    %v1214 = vmul.f32 1.0, %v1213
    %v1215 = vtanh.pop %v1195
    %v1216 = vmul.f32 %v1214, %v1083
    %1218 = vrot.lane.b32.xlu0 %v1215, 64
    %v1219 = vpop.permute.xlu0 %1218
    %v1221 = vmul.f32 %v1214, %v1219
    %1223 = vrot.lane.b32.xlu0 %v1221, 32
    %v1224 = vpop.permute.xlu0 %1223
    %v1226 = vadd.f32 %v1216, %v1224
    %v1227 = vtanh.pop %v1226
    %1229 = vrot.lane.b32.xlu0 %v1227, 64
    %v1230 = vpop.permute.xlu0 %1229
    %v1232 = vmul.f32 %v1214, %v1230
    %v1233 = vpack.c.bf16 %v1232, %v1232
    %1235 = vrot.lane.b32.xlu0 %v1233, 32
    %v1236 = vpop.permute.xlu0 %1235
    %v1238 = vsel %vm235, %v1236, 0
    %1240 = vmatpush.bf16.msra.mxu0 0
    %1241 = vmatpush.bf16.msra.mxu0 0
    %1242 = vmatpush.bf16.msra.mxu0 0
    %1243 = vmatpush.bf16.msra.mxu0 0
    %1244 = vmatpush.bf16.msra.mxu0 0
    %1245 = vmatpush.bf16.msra.mxu0 0
    %1246 = vmatpush.bf16.msra.mxu0 %v232
    %1247 = vmatpush.bf16.msra.mxu0 %v231
    %1248 = vmatmul.bf16.gmra.mxu0 %v1238
    %v1249 = vpop.f32.mrf.mxu0
    %v1250 = vadd.f32 %v1192, %v1249
    %v1251 = vpop.f32.mrf.mxu0
    %1252 = vdwg.mxu0
    %v1253 = vadd.f32 %v1250, %v83
    %v1254 = vxor.u32 %v1253, 2147483648
    %v1255 = vmul.f32 %v1254, 1.442695
    %v1256 = vpow.pop %v1255
    %v1257 = vadd.f32 %v1256, 1.0
    %v1258 = vrcp.pop %v1257
    %v1259 = vmul.f32 %v1257, %v1258
    %v1260 = vsub.f32 1.0, %v1259
    %v1261 = vmul.f32 %v1258, %v1260
    %v1262 = vadd.f32 %v1258, %v1261
    %vm1263 = vweird.f32 %v1257
    %vm1264 = vweird.f32 %v1258
    %vm1265 = vmor %vm1263, %vm1264
    %v1266 = vsel %vm1265, %v1258, %v1262
    %v1267 = vand.u32 2147483647, %v1257
    %vm1268 = vcmp.eq.f32.partialorder %v1267, 8.507059e+37
    %v1269 = vand.u32 %v1257, 2147483648
    %v1270 = vor.u32 1.1754944e-38, %v1269
    %v1271 = vsel %vm1268, %v1270, %v1266
    %v1272 = vmul.f32 1.0, %v1271
    %v1273 = vtanh.pop %v1253
    %v1274 = vmul.f32 %v1272, %v1141
    %1276 = vrot.lane.b32.xlu0 %v1273, 64
    %v1277 = vpop.permute.xlu0 %1276
    %v1279 = vmul.f32 %v1272, %v1277
    %1281 = vrot.lane.b32.xlu0 %v1279, 32
    %v1282 = vpop.permute.xlu0 %1281
    %v1284 = vadd.f32 %v1274, %v1282
    %v1285 = vtanh.pop %v1284
    %1287 = vrot.lane.b32.xlu0 %v1285, 64
    %v1288 = vpop.permute.xlu0 %1287
    %v1290 = vmul.f32 %v1272, %v1288
    %v1291 = vpack.c.bf16 %v1290, %v1290
    %v1293 = vperm.slane %v85, 0
    %1296 = vrot.lane.b32.xlu0 %v1291, 32
    %v1297 = vpop.permute.xlu0 %1296
    %v1302 = vunpack.c.l.b16 %v73
    %v1303 = vunpack.c.l.b16 %v74
    %v1304 = vunpack.c.l.b16 %v75
    %v1305 = vunpack.c.l.b16 %v76
    %v1306 = vpack.c.b16 %v1303, %v1302
    %v1307 = vpack.c.b16 %v1305, %v1304
    %v1311 = vsel %vm235, %v1297, 0
    %1313 = vmatpush.bf16.msra.mxu0 0
    %1314 = vmatpush.bf16.msra.mxu0 0
    %1315 = vmatpush.bf16.msra.mxu0 0
    %1316 = vmatpush.bf16.msra.mxu0 0
    %1317 = vmatpush.bf16.msra.mxu0 0
    %1318 = vmatpush.bf16.msra.mxu0 0
    %1319 = vmatpush.bf16.msra.mxu0 %v1307
    %1320 = vmatpush.bf16.msra.mxu0 %v1306
    %1321 = vmatmul.bf16.gmra.mxu0 %v1311
    %v1322 = vpop.f32.mrf.mxu0
    %v1323 = vadd.f32 %v1293, %v1322
    %v1324 = vpop.f32.mrf.mxu0
    %1325 = vdwg.mxu0
    %vm1326 = vcmask 17408
    %1327 = vst.msk [vmem:[#allocation7] sm:$0x3] %vm1326, %v1323
    // Predicated region
    $region38: #{_lambda_.1} parent=1 // pred_check
      _
    $region39: #{_lambda_.1} parent=1 // pred_check_branch
      %1329 = sbr.rel (0) target = $region41
    $region40: #{_lambda_.1} parent=1 // pred_region
      %1331 = vsyncadd [#allocation4], 0
      %s1333 = sshll.u32 [#allocation7], 4
      %s1334 = int_to_ptr.vmem [resolvable:$true] %s1333
      %s1335 = sshll.u32 %s7, 4
      %s1336 = int_to_ptr.hbm [resolvable:$true] %s1335
      %1338 = dma.vmem_to_hbm [thread:$0]  %s1334, 32, %s1336, [#allocation4]
    $region41: #{_lambda_.1} parent=1 // pred_fallthru
      _
    // Predicated region
    $region42: #{_lambda_.1} parent=1 // pred_check
      _
    $region43: #{_lambda_.1} parent=1 // pred_check_branch
      %1340 = sbr.rel (0) target = $region45
    $region44: #{_lambda_.1} parent=1 // pred_region
      %1342 = dma.done [#allocation4], 32
    $region45: #{_lambda_.1} parent=1 // pred_fallthru
      _
    %1343 = vsyncpa [#allocation3], 1
    %1344 = vsyncpa [#allocation6], 1
    %1345 = vsyncpa [#allocation4], 1

</llo_original>
